<compile_context>
chip_gen: v7x
topology: tpu7x:2x2x1
jax: 0.10.0
libtpu: 0.0.40
codegen_flags: <defaults>
</compile_context>

<pallas_src>
import functools

import jax
import jax.numpy as jnp
from jax import lax
from jax.experimental import pallas as pl
from jax.experimental.pallas import tpu as pltpu


def _round_up(x, m):
    return ((x + m - 1) // m) * m


def _encoder_head_kernel(seed_ref, feat_ref, w_ref, b_ref, out_ref, *,
                         apply_dropout: bool):
    """One E-tile of: dropout(relu(feat @ w + b), p=0.5)."""
    # fc (the replaced inception.fc): (Bp, K) bf16 @ (K, TE) bf16 -> f32 (MXU).
    y = jnp.dot(feat_ref[...], w_ref[...], preferred_element_type=jnp.float32)
    y = y + b_ref[...]            # bias, (1, TE) broadcast over rows
    y = jnp.maximum(y, 0.0)       # ReLU (VPU)

    if apply_dropout:
        # Dropout(p=0.5), training mode.  Counter-based integer hash on the
        # VPU (portable: works on TPU and in interpret mode).  program_id is
        # folded into the element index so each E-tile gets an independent mask.
        bp, te = out_ref.shape
        rows = lax.broadcasted_iota(jnp.int32, (bp, te), 0)
        cols = lax.broadcasted_iota(jnp.int32, (bp, te), 1)
        cols = cols + pl.program_id(0) * te
        idx = (rows * (pl.num_programs(0) * te) + cols).astype(jnp.uint32)
        h = idx ^ seed_ref[0].astype(jnp.uint32)
        h = (h ^ (h >> 16)) * jnp.uint32(0x7FEB352D)
        h = (h ^ (h >> 15)) * jnp.uint32(0x846CA68B)
        h = h ^ (h >> 16)
        keep = (h & jnp.uint32(1)) == jnp.uint32(0)     # Bernoulli(0.5)
        y = jnp.where(keep, y * 2.0, 0.0)               # scale by 1/(1-p)

    out_ref[...] = y


def encoder_head(features, w_fc, b_fc, seed, *, training=True, tile_e=128):
    """features: [B, K], w_fc: [K, E], b_fc: [E], seed: int scalar."""
    B, K = features.shape
    E = w_fc.shape[1]

    # bf16 MXU inputs, f32 accumulation.
    feat = features.astype(jnp.bfloat16)
    w = w_fc.astype(jnp.bfloat16)
    b = b_fc.astype(jnp.float32)

    # Sublane/lane-dense padding: B -> multiple of 8, E -> multiple of 128 so
    # the output stores are unmasked and the grid tiles E evenly.
    b_pad = max(_round_up(B, 8), 8)
    e_pad = _round_up(E, tile_e)
    if b_pad != B:
        feat = jnp.pad(feat, ((0, b_pad - B), (0, 0)))
    if e_pad != E:
        w = jnp.pad(w, ((0, 0), (0, e_pad - E)))
        b = jnp.pad(b, (0, e_pad - E))
    b2d = b.reshape(1, e_pad)

    seed_arr = jnp.asarray([seed], dtype=jnp.int32)
    kernel = functools.partial(_encoder_head_kernel, apply_dropout=training)

    out = pl.pallas_call(
        kernel,
        out_shape=jax.ShapeDtypeStruct((b_pad, e_pad), jnp.float32),
        grid_spec=pl.GridSpec(
            grid=(e_pad // tile_e,),
            in_specs=[
                pl.BlockSpec(memory_space=pltpu.MemorySpace.SMEM),   # seed
                pl.BlockSpec((b_pad, K), lambda j: (0, 0)),          # features
                pl.BlockSpec((K, tile_e), lambda j: (0, j)),         # fc weight
                pl.BlockSpec((1, tile_e), lambda j: (0, j)),         # fc bias
            ],
            out_specs=pl.BlockSpec((b_pad, tile_e), lambda j: (0, j)),
        ),
        compiler_params=pltpu.CompilerParams(
            # E tiles are independent -> shard across v7x's two TensorCores.
            dimension_semantics=("parallel",),
            vmem_limit_bytes=32 * 1024 * 1024,
        ),
    )(seed_arr, feat, w, b2d)

    return out[:B, :E]


def encoder_forward(images, params, seed=0, *, training=True):
    """Full Encoder.forward. images: [B, 3, H, W] (NCHW, float32)."""
    # ---- backbone stand-in (see TODO(synk) at top of file) ----
    pooled = jnp.mean(images, axis=(2, 3))               # [B, 3] global avg pool
    features = pooled @ params["backbone_lift"]          # [B, 2048]
    # ---- Pallas head: fc -> relu -> dropout ----
    return encoder_head(features, params["w_fc"], params["b_fc"], seed,
                        training=training)


def init_params(key, embed_size, in_features=2048):
    k1, k2, k3 = jax.random.split(key, 3)
    return {
        # stand-in for the pretrained inception feature extractor
        "backbone_lift": jax.random.normal(k1, (3, in_features), jnp.float32) * 5.0,
        # replaced fc layer: nn.Linear(in_features, embed_size)
        # (PyTorch weight is [embed, in]; stored here transposed, in bf16)
        "w_fc": (jax.random.normal(k2, (in_features, embed_size), jnp.float32)
                 * 0.05).astype(jnp.bfloat16),
        "b_fc": jax.random.normal(k3, (embed_size,), jnp.float32) * 0.1,
    }


if __name__ == "__main__":
    key = jax.random.PRNGKey(0)
    k_img, k_par = jax.random.split(key)

    B, C, H, W = 2, 3, 32, 32           # small image batch (NCHW)
    embed_size = 256                    # E -> two 128-lane tiles

    images = jax.random.normal(k_img, (B, C, H, W), jnp.float32)
    params = init_params(k_par, embed_size)

    # Training-mode forward (PyTorch nn.Module default): fc -> relu -> dropout.
    out_train = jax.block_until_ready(
        encoder_forward(images, params, seed=0, training=True))
    assert out_train.shape == (B, embed_size), out_train.shape
    assert out_train.dtype == jnp.float32, out_train.dtype
    assert bool(jnp.all(out_train >= 0.0))

    # Eval-mode forward (no dropout) checked against a pure-JAX reference.
    out_eval = jax.block_until_ready(
        encoder_forward(images, params, seed=0, training=False))
    pooled = jnp.mean(images, axis=(2, 3))
    feats = (pooled @ params["backbone_lift"]).astype(jnp.bfloat16)
    ref = jnp.maximum(
        jnp.dot(feats, params["w_fc"].astype(jnp.bfloat16),
                preferred_element_type=jnp.float32) + params["b_fc"], 0.0)
    assert bool(jnp.allclose(out_eval, ref, rtol=2e-2, atol=2e-3)), (
        float(jnp.max(jnp.abs(out_eval - ref))))

    # Every training element is either dropped (0) or 2x its eval value.
    kept = jnp.isclose(out_train, 2.0 * out_eval, rtol=2e-2, atol=2e-3)
    dropped = jnp.abs(out_train) <= 1e-6
    assert bool(jnp.all(kept | dropped))

    print("KERNEL_OK")
</pallas_src>

<mosaic_0001>
module attributes {stable_mosaic.version = 11 : i64} {
  func.func @_encoder_head_kernel(%arg0: i32, %arg1: memref<1xi32, #tpu.memory_space<smem>>, %arg2: memref<8x2048xbf16, #tpu.memory_space<vmem>>, %arg3: memref<2048x128xbf16, #tpu.memory_space<vmem>>, %arg4: memref<1x128xf32, #tpu.memory_space<vmem>>, %arg5: memref<8x128xf32, #tpu.memory_space<vmem>>) attributes {dimension_semantics = [#tpu.dimension_semantics<parallel>], iteration_bounds = array<i64: 2>, scalar_prefetch = 0 : i64, scratch_operands = 0 : i64, tpu.core_type = #tpu.core_type<tc>, window_params = [{transform_indices = @transform_0, window_bounds = array<i64: 1>}, {pipeline_mode = #tpu.pipeline_mode<synchronous>, transform_indices = @transform_1, window_bounds = array<i64: 8, 2048>}, {transform_indices = @transform_2, window_bounds = array<i64: 2048, 128>}, {transform_indices = @transform_3, window_bounds = array<i64: 1, 128>}, {transform_indices = @transform_4, window_bounds = array<i64: 8, 128>}]} {
    %c0 = arith.constant 0 : index
    %c0_0 = arith.constant 0 : index
    %0 = vector.load %arg2[%c0, %c0_0] : memref<8x2048xbf16, #tpu.memory_space<vmem>>, vector<8x2048xbf16>
    %c0_1 = arith.constant 0 : index
    %c0_2 = arith.constant 0 : index
    %1 = vector.load %arg3[%c0_1, %c0_2] : memref<2048x128xbf16, #tpu.memory_space<vmem>>, vector<2048x128xbf16>
    %cst = arith.constant dense<0.000000e+00> : vector<8x128xf32>
    %2 = tpu.matmul %0, %1, %cst {dimension_numbers = #tpu.dot_dimension_numbers<[1], [0], [0], [1], [0, 0, 1, 1], [], []>} : vector<8x2048xbf16>, vector<2048x128xbf16>, vector<8x128xf32> -> vector<8x128xf32>
    %c0_3 = arith.constant 0 : index
    %c0_4 = arith.constant 0 : index
    %3 = vector.load %arg4[%c0_3, %c0_4] : memref<1x128xf32, #tpu.memory_space<vmem>>, vector<1x128xf32>
    %4 = vector.broadcast %3 : vector<1x128xf32> to vector<8x128xf32>
    %5 = arith.addf %2, %4 : vector<8x128xf32>
    %cst_5 = arith.constant 0.000000e+00 : f32
    %6 = vector.broadcast %cst_5 : f32 to vector<8x128xf32>
    %7 = arith.maximumf %5, %6 : vector<8x128xf32>
    %8 = tpu.iota {dimensions = array<i32: 0>} : vector<8x128xi32>
    %9 = tpu.iota {dimensions = array<i32: 1>} : vector<8x128xi32>
    %c128_i32 = arith.constant 128 : i32
    %10 = arith.muli %arg0, %c128_i32 : i32
    %11 = vector.broadcast %10 : i32 to vector<8x128xi32>
    %12 = arith.addi %9, %11 : vector<8x128xi32>
    %c256_i32 = arith.constant 256 : i32
    %13 = vector.broadcast %c256_i32 : i32 to vector<8x128xi32>
    %14 = arith.muli %8, %13 : vector<8x128xi32>
    %15 = arith.addi %14, %12 : vector<8x128xi32>
    %c0_6 = arith.constant 0 : index
    %16 = memref.load %arg1[%c0_6] : memref<1xi32, #tpu.memory_space<smem>>
    %17 = vector.broadcast %16 : i32 to vector<8x128xi32>
    %18 = arith.xori %15, %17 : vector<8x128xi32>
    %c16_i32 = arith.constant 16 : i32
    %19 = vector.broadcast %c16_i32 : i32 to vector<8x128xi32>
    %20 = arith.shrui %18, %19 : vector<8x128xi32>
    %21 = arith.xori %18, %20 : vector<8x128xi32>
    %c2146121005_i32 = arith.constant 2146121005 : i32
    %22 = vector.broadcast %c2146121005_i32 : i32 to vector<8x128xi32>
    %23 = arith.muli %21, %22 : vector<8x128xi32>
    %c15_i32 = arith.constant 15 : i32
    %24 = vector.broadcast %c15_i32 : i32 to vector<8x128xi32>
    %25 = arith.shrui %23, %24 : vector<8x128xi32>
    %26 = arith.xori %23, %25 : vector<8x128xi32>
    %c-2073254261_i32 = arith.constant -2073254261 : i32
    %27 = vector.broadcast %c-2073254261_i32 : i32 to vector<8x128xi32>
    %28 = arith.muli %26, %27 : vector<8x128xi32>
    %c16_i32_7 = arith.constant 16 : i32
    %29 = vector.broadcast %c16_i32_7 : i32 to vector<8x128xi32>
    %30 = arith.shrui %28, %29 : vector<8x128xi32>
    %31 = arith.xori %28, %30 : vector<8x128xi32>
    %c1_i32 = arith.constant 1 : i32
    %32 = vector.broadcast %c1_i32 : i32 to vector<8x128xi32>
    %33 = arith.andi %31, %32 : vector<8x128xi32>
    %c0_i32 = arith.constant 0 : i32
    %34 = vector.broadcast %c0_i32 : i32 to vector<8x128xi32>
    %35 = arith.cmpi eq, %33, %34 : vector<8x128xi32>
    %cst_8 = arith.constant 2.000000e+00 : f32
    %36 = vector.broadcast %cst_8 : f32 to vector<8x128xf32>
    %37 = arith.mulf %7, %36 : vector<8x128xf32>
    %cst_9 = arith.constant 0.000000e+00 : f32
    %38 = vector.broadcast %cst_9 : f32 to vector<8x128xf32>
    %39 = arith.select %35, %37, %38 : vector<8x128xi1>, vector<8x128xf32>
    %c0_10 = arith.constant 0 : index
    %c0_11 = arith.constant 0 : index
    %40 = vector.load %arg5[%c0_10, %c0_11] : memref<8x128xf32, #tpu.memory_space<vmem>>, vector<8x128xf32>
    tpu.vector_store %arg5[%c0_10, %c0_11], %39 {strides = array<i32>} : memref<8x128xf32, #tpu.memory_space<vmem>>, vector<8x128xf32>,
    return
  }
  func.func @transform_0(%arg0: i32) -> i32 {
    %c0_i32 = arith.constant 0 : i32
    %c0_i32_0 = arith.constant 0 : i32
    return %c0_i32 : i32
  }
  func.func @transform_1(%arg0: i32) -> (i32, i32) {
    %c0_i32 = arith.constant 0 : i32
    %c0_i32_0 = arith.constant 0 : i32
    %c0_i32_1 = arith.constant 0 : i32
    return %c0_i32, %c0_i32_0 : i32, i32
  }
  func.func @transform_2(%arg0: i32) -> (i32, i32) {
    %c0_i32 = arith.constant 0 : i32
    %c0_i32_0 = arith.constant 0 : i32
    return %c0_i32, %arg0 : i32, i32
  }
  func.func @transform_3(%arg0: i32) -> (i32, i32) {
    %c0_i32 = arith.constant 0 : i32
    %c0_i32_0 = arith.constant 0 : i32
    return %c0_i32, %arg0 : i32, i32
  }
  func.func @transform_4(%arg0: i32) -> (i32, i32) {
    %c0_i32 = arith.constant 0 : i32
    %c0_i32_0 = arith.constant 0 : i32
    return %c0_i32, %arg0 : i32, i32
  }
}

</mosaic_0001>

<llo_original>
// kernel: tpu_custom_call.1
$region0: #{tpu_custom_call.1}
  #allocation0 [shape = 'u32[]', space=smem, size = 0x4, offset = 0x4, fixed_abs, tag = 'smem constant byte address 0x4 - core index']
  #allocation1 [shape = 'u32[144,128]{1,0:T(1,128)}', space=vmem, size = 0x12000, scoped, tag = 'internal scratch']
  #allocation2 [shape = 's32[1]{0:T(128)S(6)}', space=smem, size = 0x200, scoped, tag = 'scoped memory for tpu_custom_call.1']
  %s0 = inlined_call_operand.<no memory space> [shape: s32[1], index: 0, kind: input, shape index: {}]
  %s1 = inlined_call_operand.hbm [shape: bf16[8,2048], index: 1, kind: input, shape index: {}]
  %s2 = inlined_call_operand.hbm [shape: bf16[2048,256], index: 2, kind: input, shape index: {}]
  %s3 = inlined_call_operand.vmem [shape: f32[1,256], index: 3, kind: input, shape index: {}]
  %s4 = inlined_call_operand.hbm [shape: f32[8,256], index: 4, kind: output, shape index: {}]
  %s5 = sld [smem:[#allocation0]]
  $region57: #{tpu_custom_call.1} parent=0
    _
  %s7 = ssub.s32 1, %s5
  %s8 = scalar_select 0, %s7, %s5
  %9 = sst [smem:[#allocation2]] %s0
  $region1: #{tpu_custom_call.1} parent=0
    #allocation3 [shape = 'u8[32768]{0}', space=vmem, size = 0x8000, scoped, tag = 'input window, operand 1, single buffered']
    #allocation4 [shape = 's32[2]{0}', space=sflag, size = 0x8, scoped, tag = 'scoped memory for tpu_custom_call.1']
    #allocation5 [shape = 's32[2]{0}', space=sflag, size = 0x8, scoped, tag = 'scoped memory for tpu_custom_call.1']
    #allocation6 [shape = 'u8[1048576]{0}', space=vmem, size = 0x100000, scoped, tag = 'input window, operand 2']
    #allocation7 [shape = 's32[2]{0}', space=sflag, size = 0x8, scoped, tag = 'scoped memory for tpu_custom_call.1']
    #allocation8 [shape = 'u8[8192]{0}', space=vmem, size = 0x2000, scoped, tag = 'output window, operand 0']
    %10 = vsyncpa [#allocation4], 0
    %11 = vsyncpa [#allocation7], 0
    %s12 = scalar_lea.sflag [#allocation7], 1
    %13 = vsyncpa %s12, 0
    %14 = vsyncpa [#allocation5], 0
    %s15 = scalar_lea.sflag [#allocation5], 1
    %16 = vsyncpa %s15, 0
    loop: start=0, step=1, limit=4
    $region2: #{tpu_custom_call.1} parent=1 // loop_pre_header
      _
    $region3: #{tpu_custom_call.1} parent=1 // loop_header
      %s18 = sphi 0, %s22
      %p19 = scmp.ge.s32.totalorder %s18, 4
      %s26 = sphi 0, %s26
      %s28 = sphi 0, %s26
      %s29 = sphi 0, %s28
      %s43 = sphi 0, %s29
      %s47 = sphi 0, %s47
      %s49 = sphi 0, %s47
      %s50 = sphi 0, %s49
      %s64 = sphi 0, %s50
      %s70 = sphi 0, %s72
      %s73 = sphi 0, %s70
      %s74 = sphi 0, %s73
      %s90 = sphi 0, %s74
      %s96 = sphi 0, %s98
      %s99 = sphi 0, %s96
      %s100 = sphi 0, %s99
      %s116 = sphi 0, %s100
      %s122 = sphi 0, %s124
      %s125 = sphi 0, %s122
      %s126 = sphi 0, %s125
      %s142 = sphi 0, %s126
    $region4: #{tpu_custom_call.1} parent=1 // loop_header_branch
      %21 = sbr.rel (%p19) target = $region8
    $region5: #{tpu_custom_call.1} parent=1 // loop_body
      %s23 = ssub.s32 %s18, 1
      %s24 = ssub.s32 %s18, 2
      %s25 = sadd.s32 %s18, 1
      %s27 = sadd.s32 %s26, 1
      %p30 = scmp.eq.s32.totalorder %s18, 1
      %p31 = scmp.ne.s32.totalorder %s26, %s28
      %p32 = scmp.eq.s32.totalorder %s18, 0
      %p33 = por %p31, %p32
      %p34 = scmp.ne.s32.totalorder %s26, %s28
      %p35 = scmp.eq.s32.totalorder %s23, 1
      %p36 = por %p34, %p35
      %p37 = scmp.ne.s32.totalorder %s28, %s29
      %p38 = scmp.eq.s32.totalorder %s23, 0
      %p39 = por %p37, %p38
      %p40 = scmp.ne.s32.totalorder %s28, %s29
      %p41 = scmp.eq.s32.totalorder %s24, 1
      %p42 = por %p40, %p41
      %p44 = scmp.ne.s32.totalorder %s29, %s43
      %p45 = scmp.eq.s32.totalorder %s24, 0
      %p46 = por %p44, %p45
      %s48 = sadd.s32 %s47, 1
      %p51 = scmp.eq.s32.totalorder %s18, 1
      %p52 = scmp.ne.s32.totalorder %s47, %s49
      %p53 = scmp.eq.s32.totalorder %s18, 0
      %p54 = por %p52, %p53
      %p55 = scmp.ne.s32.totalorder %s47, %s49
      %p56 = scmp.eq.s32.totalorder %s23, 1
      %p57 = por %p55, %p56
      %p58 = scmp.ne.s32.totalorder %s49, %s50
      %p59 = scmp.eq.s32.totalorder %s23, 0
      %p60 = por %p58, %p59
      %p61 = scmp.ne.s32.totalorder %s49, %s50
      %p62 = scmp.eq.s32.totalorder %s24, 1
      %p63 = por %p61, %p62
      %p65 = scmp.ne.s32.totalorder %s50, %s64
      %p66 = scmp.eq.s32.totalorder %s24, 0
      %p67 = por %p65, %p66
      %s68 = ssub.s32 %s18, %s25
      %p69 = scmp.eq.s32.totalorder %s68, 0
      %s71 = sadd.s32 %s70, 1
      %s72 = scalar_select %p69, %s70, %s71
      %p75 = pneg %p69
      %p76 = scmp.eq.s32.totalorder %s18, 1
      %p77 = por %p75, %p76
      %p78 = scmp.ne.s32.totalorder %s70, %s73
      %p79 = scmp.eq.s32.totalorder %s18, 0
      %p80 = por %p78, %p79
      %p81 = scmp.ne.s32.totalorder %s70, %s73
      %p82 = scmp.eq.s32.totalorder %s23, 1
      %p83 = por %p81, %p82
      %p84 = scmp.ne.s32.totalorder %s73, %s74
      %p85 = scmp.eq.s32.totalorder %s23, 0
      %p86 = por %p84, %p85
      %p87 = scmp.ne.s32.totalorder %s73, %s74
      %p88 = scmp.eq.s32.totalorder %s24, 1
      %p89 = por %p87, %p88
      %p91 = scmp.ne.s32.totalorder %s74, %s90
      %p92 = scmp.eq.s32.totalorder %s24, 0
      %p93 = por %p91, %p92
      %s94 = ssub.s32 %s18, %s25
      %p95 = scmp.eq.s32.totalorder %s94, 0
      %s97 = sadd.s32 %s96, 1
      %s98 = scalar_select %p95, %s96, %s97
      %p101 = pneg %p95
      %p102 = scmp.eq.s32.totalorder %s18, 1
      %p103 = por %p101, %p102
      %p104 = scmp.ne.s32.totalorder %s96, %s99
      %p105 = scmp.eq.s32.totalorder %s18, 0
      %p106 = por %p104, %p105
      %p107 = scmp.ne.s32.totalorder %s96, %s99
      %p108 = scmp.eq.s32.totalorder %s23, 1
      %p109 = por %p107, %p108
      %p110 = scmp.ne.s32.totalorder %s99, %s100
      %p111 = scmp.eq.s32.totalorder %s23, 0
      %p112 = por %p110, %p111
      %p113 = scmp.ne.s32.totalorder %s99, %s100
      %p114 = scmp.eq.s32.totalorder %s24, 1
      %p115 = por %p113, %p114
      %p117 = scmp.ne.s32.totalorder %s100, %s116
      %p118 = scmp.eq.s32.totalorder %s24, 0
      %p119 = por %p117, %p118
      %s120 = ssub.s32 %s18, %s25
      %p121 = scmp.eq.s32.totalorder %s120, 0
      %s123 = sadd.s32 %s122, 1
      %s124 = scalar_select %p121, %s122, %s123
      %p127 = pneg %p121
      %p128 = scmp.eq.s32.totalorder %s18, 1
      %p129 = por %p127, %p128
      %p130 = scmp.ne.s32.totalorder %s122, %s125
      %p131 = scmp.eq.s32.totalorder %s18, 0
      %p132 = por %p130, %p131
      %p133 = scmp.ne.s32.totalorder %s122, %s125
      %p134 = scmp.eq.s32.totalorder %s23, 1
      %p135 = por %p133, %p134
      %p136 = scmp.ne.s32.totalorder %s125, %s126
      %p137 = scmp.eq.s32.totalorder %s23, 0
      %p138 = por %p136, %p137
      %p139 = scmp.ne.s32.totalorder %s125, %s126
      %p140 = scmp.eq.s32.totalorder %s24, 1
      %p141 = por %p139, %p140
      %p143 = scmp.ne.s32.totalorder %s126, %s142
      %p144 = scmp.eq.s32.totalorder %s24, 0
      %p145 = por %p143, %p144
      %p146 = scmp.le.s32.totalorder 1, %s18
      %p147 = scmp.lt.s32.totalorder %s18, 3
      %p148 = pnand %p146, %p147
      %p149 = pneg %p148
      // Predicated region
      $region9: #{tpu_custom_call.1} parent=5 // pred_check
        _
      $region10: #{tpu_custom_call.1} parent=5 // pred_check_branch
        %151 = sbr.rel (%p148) target = $region12
      $region11: #{tpu_custom_call.1} parent=5 // pred_region
        %s152 = ssub.s32 %s18, 1
        // Predicated region
        $region13: #{tpu_custom_call.1} parent=11 // pred_check
          %p153 = pneg %p39
        $region14: #{tpu_custom_call.1} parent=11 // pred_check_branch
          %155 = sbr.rel (%p153) target = $region16
        $region15: #{tpu_custom_call.1} parent=11 // pred_region
          _
        $region16: #{tpu_custom_call.1} parent=11 // pred_fallthru
          _
        // Predicated region
        $region17: #{tpu_custom_call.1} parent=11 // pred_check
          %p156 = pneg %p60
        $region18: #{tpu_custom_call.1} parent=11 // pred_check_branch
          %158 = sbr.rel (%p156) target = $region20
        $region19: #{tpu_custom_call.1} parent=11 // pred_region
          %s160 = ssub.s32 1024, 1024
          %161 = vsyncadd [#allocation4], %s160
          %s163 = sshll.u32 [#allocation3], 4
          %s164 = int_to_ptr.vmem [resolvable:$true] %s163
          %166 = dma.hbm_to_vmem [thread:$0]  %s1, 1024, %s164, [#allocation4]
        $region20: #{tpu_custom_call.1} parent=11 // pred_fallthru
          _
      $region12: #{tpu_custom_call.1} parent=5 // pred_fallthru
        _
      %p167 = scmp.lt.s32.totalorder %s18, 2
      // Predicated region
      $region21: #{tpu_custom_call.1} parent=5 // pred_check
        %p168 = pneg %p167
      $region22: #{tpu_custom_call.1} parent=5 // pred_check_branch
        %170 = sbr.rel (%p168) target = $region24
      $region23: #{tpu_custom_call.1} parent=5 // pred_region
        // Predicated region
        $region25: #{tpu_custom_call.1} parent=23 // pred_check
          %p171 = pneg %p80
        $region26: #{tpu_custom_call.1} parent=23 // pred_check_branch
          %173 = sbr.rel (%p171) target = $region28
        $region27: #{tpu_custom_call.1} parent=23 // pred_region
          %s174 = sand.u32 %s70, 1
          %s175 = scalar_lea.sflag [#allocation7], %s174
          %s176 = sand.u32 %s70, 1
          %s177 = smul.addr %s176, 1024
          %s178 = scalar_lea.vmem [#allocation6], %s177
          %s180 = ssub.s32 16384, 16384
          %181 = vsyncadd %s175, %s180
          %s182 = smul.addr %s18, 64
          %s183 = scalar_lea.hbm %s2, %s182
          %s184 = sshll.u32 %s178, 4
          %s185 = int_to_ptr.vmem [resolvable:$true] %s184
          %190 = dma.hbm_to_vmem [thread:$0]  %s183, 16384, %s185, %s175, 128, 64, 4
        $region28: #{tpu_custom_call.1} parent=23 // pred_fallthru
          _
        // Predicated region
        $region29: #{tpu_custom_call.1} parent=23 // pred_check
          %p191 = pneg %p106
        $region30: #{tpu_custom_call.1} parent=23 // pred_check_branch
          %193 = sbr.rel (%p191) target = $region32
        $region31: #{tpu_custom_call.1} parent=23 // pred_region
          %p194 = scmp.lt.s32.totalorder %s18, 1
          %s195 = scalar_select %p194, %s18, 1
          %s196 = scalar_lea.vmem %s3, %s195
        $region32: #{tpu_custom_call.1} parent=23 // pred_fallthru
          _
      $region24: #{tpu_custom_call.1} parent=5 // pred_fallthru
        _
      %p197 = scmp.le.s32.totalorder 1, %s18
      %p198 = scmp.lt.s32.totalorder %s18, 3
      %p199 = pnand %p197, %p198
      %p200 = pneg %p199
      // Predicated region
      $region33: #{tpu_custom_call.1} parent=5 // pred_check
        _
      $region34: #{tpu_custom_call.1} parent=5 // pred_check_branch
        %202 = sbr.rel (%p199) target = $region36
      $region35: #{tpu_custom_call.1} parent=5 // pred_region
        %s203 = ssub.s32 %s18, 1
        // Predicated region
        $region37: #{tpu_custom_call.1} parent=35 // pred_check
          %p204 = pneg %p60
        $region38: #{tpu_custom_call.1} parent=35 // pred_check_branch
          %206 = sbr.rel (%p204) target = $region40
        $region39: #{tpu_custom_call.1} parent=35 // pred_region
          %207 = dma.done [#allocation4], 1024
        $region40: #{tpu_custom_call.1} parent=35 // pred_fallthru
          _
        %s208 = sand.u32 %s73, 1
        %s209 = scalar_lea.sflag [#allocation7], %s208
        %s210 = sand.u32 %s73, 1
        %s211 = smul.addr %s210, 1024
        %s212 = scalar_lea.vmem [#allocation6], %s211
        // Predicated region
        $region41: #{tpu_custom_call.1} parent=35 // pred_check
          %p213 = pneg %p86
        $region42: #{tpu_custom_call.1} parent=35 // pred_check_branch
          %215 = sbr.rel (%p213) target = $region44
        $region43: #{tpu_custom_call.1} parent=35 // pred_region
          %216 = dma.done %s209, 16384
        $region44: #{tpu_custom_call.1} parent=35 // pred_fallthru
          _
        %p217 = pneg %p39
        %p218 = pneg %p36
        %p219 = pneg %p60
        %p220 = pneg %p57
        %s221 = sand.u32 %s73, 1
        %s222 = scalar_lea.sflag [#allocation7], %s221
        %s223 = sand.u32 %s73, 1
        %s224 = smul.addr %s223, 1024
        %s225 = scalar_lea.vmem [#allocation6], %s224
        %p226 = pneg %p86
        %p227 = pneg %p83
        %p228 = scmp.lt.s32.totalorder %s23, 1
        %s229 = scalar_select %p228, %s23, 1
        %s230 = scalar_lea.vmem %s3, %s229
        %p231 = pneg %p112
        %p232 = pneg %p109
        %p233 = pneg %p138
        %p234 = pneg %p135
        %s235 = sand.u32 %s125, 1
        %s236 = scalar_lea.sflag [#allocation5], %s235
        %s237 = sand.u32 %s125, 1
        %s238 = smul.addr %s237, 8
        %s239 = scalar_lea.vmem [#allocation8], %s238
        %p240 = scmp.lt.s32.totalorder %s23, 1
        %s241 = scalar_select %p240, %s23, 1
        %s242 = scalar_lea.vmem %s3, %s241
        %v244 = vld [vmem:[#allocation3] sm:$0xff]
        %v245 = vld [vmem:[#allocation3 + $0x8] sm:$0xff]
        %v246 = vld [vmem:[#allocation3 + $0x10] sm:$0xff]
        %v247 = vld [vmem:[#allocation3 + $0x18] sm:$0xff]
        %v248 = vld [vmem:[#allocation3 + $0x20] sm:$0xff]
        %v249 = vld [vmem:[#allocation3 + $0x28] sm:$0xff]
        %v250 = vld [vmem:[#allocation3 + $0x30] sm:$0xff]
        %v251 = vld [vmem:[#allocation3 + $0x38] sm:$0xff]
        %v252 = vld [vmem:[%s212] sm:$0xf]
        %v253 = vld [vmem:[%s212 + $0x4] sm:$0xf]
        %v254 = vld [vmem:[%s212 + $0x8] sm:$0xf]
        %v255 = vld [vmem:[%s212 + $0xc] sm:$0xf]
        %v256 = vld [vmem:[%s212 + $0x10] sm:$0xf]
        %v257 = vld [vmem:[%s212 + $0x14] sm:$0xf]
        %v258 = vld [vmem:[%s212 + $0x18] sm:$0xf]
        %v259 = vld [vmem:[%s212 + $0x1c] sm:$0xf]
        %v260 = vld [vmem:[%s212 + $0x20] sm:$0xf]
        %v261 = vld [vmem:[%s212 + $0x24] sm:$0xf]
        %v262 = vld [vmem:[%s212 + $0x28] sm:$0xf]
        %v263 = vld [vmem:[%s212 + $0x2c] sm:$0xf]
        %v264 = vld [vmem:[%s212 + $0x30] sm:$0xf]
        %v265 = vld [vmem:[%s212 + $0x34] sm:$0xf]
        %v266 = vld [vmem:[%s212 + $0x38] sm:$0xf]
        %v267 = vld [vmem:[%s212 + $0x3c] sm:$0xf]
        %v268 = vld [vmem:[%s212 + $0x40] sm:$0xf]
        %v269 = vld [vmem:[%s212 + $0x44] sm:$0xf]
        %v270 = vld [vmem:[%s212 + $0x48] sm:$0xf]
        %v271 = vld [vmem:[%s212 + $0x4c] sm:$0xf]
        %v272 = vld [vmem:[%s212 + $0x50] sm:$0xf]
        %v273 = vld [vmem:[%s212 + $0x54] sm:$0xf]
        %v274 = vld [vmem:[%s212 + $0x58] sm:$0xf]
        %v275 = vld [vmem:[%s212 + $0x5c] sm:$0xf]
        %v276 = vld [vmem:[%s212 + $0x60] sm:$0xf]
        %v277 = vld [vmem:[%s212 + $0x64] sm:$0xf]
        %v278 = vld [vmem:[%s212 + $0x68] sm:$0xf]
        %v279 = vld [vmem:[%s212 + $0x6c] sm:$0xf]
        %v280 = vld [vmem:[%s212 + $0x70] sm:$0xf]
        %v281 = vld [vmem:[%s212 + $0x74] sm:$0xf]
        %v282 = vld [vmem:[%s212 + $0x78] sm:$0xf]
        %v283 = vld [vmem:[%s212 + $0x7c] sm:$0xf]
        %v284 = vld [vmem:[%s212 + $0x80] sm:$0xf]
        %v285 = vld [vmem:[%s212 + $0x84] sm:$0xf]
        %v286 = vld [vmem:[%s212 + $0x88] sm:$0xf]
        %v287 = vld [vmem:[%s212 + $0x8c] sm:$0xf]
        %v288 = vld [vmem:[%s212 + $0x90] sm:$0xf]
        %v289 = vld [vmem:[%s212 + $0x94] sm:$0xf]
        %v290 = vld [vmem:[%s212 + $0x98] sm:$0xf]
        %v291 = vld [vmem:[%s212 + $0x9c] sm:$0xf]
        %v292 = vld [vmem:[%s212 + $0xa0] sm:$0xf]
        %v293 = vld [vmem:[%s212 + $0xa4] sm:$0xf]
        %v294 = vld [vmem:[%s212 + $0xa8] sm:$0xf]
        %v295 = vld [vmem:[%s212 + $0xac] sm:$0xf]
        %v296 = vld [vmem:[%s212 + $0xb0] sm:$0xf]
        %v297 = vld [vmem:[%s212 + $0xb4] sm:$0xf]
        %v298 = vld [vmem:[%s212 + $0xb8] sm:$0xf]
        %v299 = vld [vmem:[%s212 + $0xbc] sm:$0xf]
        %v300 = vld [vmem:[%s212 + $0xc0] sm:$0xf]
        %v301 = vld [vmem:[%s212 + $0xc4] sm:$0xf]
        %v302 = vld [vmem:[%s212 + $0xc8] sm:$0xf]
        %v303 = vld [vmem:[%s212 + $0xcc] sm:$0xf]
        %v304 = vld [vmem:[%s212 + $0xd0] sm:$0xf]
        %v305 = vld [vmem:[%s212 + $0xd4] sm:$0xf]
        %v306 = vld [vmem:[%s212 + $0xd8] sm:$0xf]
        %v307 = vld [vmem:[%s212 + $0xdc] sm:$0xf]
        %v308 = vld [vmem:[%s212 + $0xe0] sm:$0xf]
        %v309 = vld [vmem:[%s212 + $0xe4] sm:$0xf]
        %v310 = vld [vmem:[%s212 + $0xe8] sm:$0xf]
        %v311 = vld [vmem:[%s212 + $0xec] sm:$0xf]
        %v312 = vld [vmem:[%s212 + $0xf0] sm:$0xf]
        %v313 = vld [vmem:[%s212 + $0xf4] sm:$0xf]
        %v314 = vld [vmem:[%s212 + $0xf8] sm:$0xf]
        %v315 = vld [vmem:[%s212 + $0xfc] sm:$0xf]
        %v316 = vld [vmem:[%s212 + $0x100] sm:$0xf]
        %v317 = vld [vmem:[%s212 + $0x104] sm:$0xf]
        %v318 = vld [vmem:[%s212 + $0x108] sm:$0xf]
        %v319 = vld [vmem:[%s212 + $0x10c] sm:$0xf]
        %v320 = vld [vmem:[%s212 + $0x110] sm:$0xf]
        %v321 = vld [vmem:[%s212 + $0x114] sm:$0xf]
        %v322 = vld [vmem:[%s212 + $0x118] sm:$0xf]
        %v323 = vld [vmem:[%s212 + $0x11c] sm:$0xf]
        %v324 = vld [vmem:[%s212 + $0x120] sm:$0xf]
        %v325 = vld [vmem:[%s212 + $0x124] sm:$0xf]
        %v326 = vld [vmem:[%s212 + $0x128] sm:$0xf]
        %v327 = vld [vmem:[%s212 + $0x12c] sm:$0xf]
        %v328 = vld [vmem:[%s212 + $0x130] sm:$0xf]
        %v329 = vld [vmem:[%s212 + $0x134] sm:$0xf]
        %v330 = vld [vmem:[%s212 + $0x138] sm:$0xf]
        %v331 = vld [vmem:[%s212 + $0x13c] sm:$0xf]
        %v332 = vld [vmem:[%s212 + $0x140] sm:$0xf]
        %v333 = vld [vmem:[%s212 + $0x144] sm:$0xf]
        %v334 = vld [vmem:[%s212 + $0x148] sm:$0xf]
        %v335 = vld [vmem:[%s212 + $0x14c] sm:$0xf]
        %v336 = vld [vmem:[%s212 + $0x150] sm:$0xf]
        %v337 = vld [vmem:[%s212 + $0x154] sm:$0xf]
        %v338 = vld [vmem:[%s212 + $0x158] sm:$0xf]
        %v339 = vld [vmem:[%s212 + $0x15c] sm:$0xf]
        %v340 = vld [vmem:[%s212 + $0x160] sm:$0xf]
        %v341 = vld [vmem:[%s212 + $0x164] sm:$0xf]
        %v342 = vld [vmem:[%s212 + $0x168] sm:$0xf]
        %v343 = vld [vmem:[%s212 + $0x16c] sm:$0xf]
        %v344 = vld [vmem:[%s212 + $0x170] sm:$0xf]
        %v345 = vld [vmem:[%s212 + $0x174] sm:$0xf]
        %v346 = vld [vmem:[%s212 + $0x178] sm:$0xf]
        %v347 = vld [vmem:[%s212 + $0x17c] sm:$0xf]
        %v348 = vld [vmem:[%s212 + $0x180] sm:$0xf]
        %v349 = vld [vmem:[%s212 + $0x184] sm:$0xf]
        %v350 = vld [vmem:[%s212 + $0x188] sm:$0xf]
        %v351 = vld [vmem:[%s212 + $0x18c] sm:$0xf]
        %v352 = vld [vmem:[%s212 + $0x190] sm:$0xf]
        %v353 = vld [vmem:[%s212 + $0x194] sm:$0xf]
        %v354 = vld [vmem:[%s212 + $0x198] sm:$0xf]
        %v355 = vld [vmem:[%s212 + $0x19c] sm:$0xf]
        %v356 = vld [vmem:[%s212 + $0x1a0] sm:$0xf]
        %v357 = vld [vmem:[%s212 + $0x1a4] sm:$0xf]
        %v358 = vld [vmem:[%s212 + $0x1a8] sm:$0xf]
        %v359 = vld [vmem:[%s212 + $0x1ac] sm:$0xf]
        %v360 = vld [vmem:[%s212 + $0x1b0] sm:$0xf]
        %v361 = vld [vmem:[%s212 + $0x1b4] sm:$0xf]
        %v362 = vld [vmem:[%s212 + $0x1b8] sm:$0xf]
        %v363 = vld [vmem:[%s212 + $0x1bc] sm:$0xf]
        %v364 = vld [vmem:[%s212 + $0x1c0] sm:$0xf]
        %v365 = vld [vmem:[%s212 + $0x1c4] sm:$0xf]
        %v366 = vld [vmem:[%s212 + $0x1c8] sm:$0xf]
        %v367 = vld [vmem:[%s212 + $0x1cc] sm:$0xf]
        %v368 = vld [vmem:[%s212 + $0x1d0] sm:$0xf]
        %v369 = vld [vmem:[%s212 + $0x1d4] sm:$0xf]
        %v370 = vld [vmem:[%s212 + $0x1d8] sm:$0xf]
        %v371 = vld [vmem:[%s212 + $0x1dc] sm:$0xf]
        %v372 = vld [vmem:[%s212 + $0x1e0] sm:$0xf]
        %v373 = vld [vmem:[%s212 + $0x1e4] sm:$0xf]
        %v374 = vld [vmem:[%s212 + $0x1e8] sm:$0xf]
        %v375 = vld [vmem:[%s212 + $0x1ec] sm:$0xf]
        %v376 = vld [vmem:[%s212 + $0x1f0] sm:$0xf]
        %v377 = vld [vmem:[%s212 + $0x1f4] sm:$0xf]
        %v378 = vld [vmem:[%s212 + $0x1f8] sm:$0xf]
        %v379 = vld [vmem:[%s212 + $0x1fc] sm:$0xf]
        %v380 = vld [vmem:[%s212 + $0x200] sm:$0xf]
        %v381 = vld [vmem:[%s212 + $0x204] sm:$0xf]
        %v382 = vld [vmem:[%s212 + $0x208] sm:$0xf]
        %v383 = vld [vmem:[%s212 + $0x20c] sm:$0xf]
        %v384 = vld [vmem:[%s212 + $0x210] sm:$0xf]
        %v385 = vld [vmem:[%s212 + $0x214] sm:$0xf]
        %v386 = vld [vmem:[%s212 + $0x218] sm:$0xf]
        %v387 = vld [vmem:[%s212 + $0x21c] sm:$0xf]
        %v388 = vld [vmem:[%s212 + $0x220] sm:$0xf]
        %v389 = vld [vmem:[%s212 + $0x224] sm:$0xf]
        %v390 = vld [vmem:[%s212 + $0x228] sm:$0xf]
        %v391 = vld [vmem:[%s212 + $0x22c] sm:$0xf]
        %v392 = vld [vmem:[%s212 + $0x230] sm:$0xf]
        %v393 = vld [vmem:[%s212 + $0x234] sm:$0xf]
        %v394 = vld [vmem:[%s212 + $0x238] sm:$0xf]
        %v395 = vld [vmem:[%s212 + $0x23c] sm:$0xf]
        %v396 = vld [vmem:[%s212 + $0x240] sm:$0xf]
        %v397 = vld [vmem:[%s212 + $0x244] sm:$0xf]
        %v398 = vld [vmem:[%s212 + $0x248] sm:$0xf]
        %v399 = vld [vmem:[%s212 + $0x24c] sm:$0xf]
        %v400 = vld [vmem:[%s212 + $0x250] sm:$0xf]
        %v401 = vld [vmem:[%s212 + $0x254] sm:$0xf]
        %v402 = vld [vmem:[%s212 + $0x258] sm:$0xf]
        %v403 = vld [vmem:[%s212 + $0x25c] sm:$0xf]
        %v404 = vld [vmem:[%s212 + $0x260] sm:$0xf]
        %v405 = vld [vmem:[%s212 + $0x264] sm:$0xf]
        %v406 = vld [vmem:[%s212 + $0x268] sm:$0xf]
        %v407 = vld [vmem:[%s212 + $0x26c] sm:$0xf]
        %v408 = vld [vmem:[%s212 + $0x270] sm:$0xf]
        %v409 = vld [vmem:[%s212 + $0x274] sm:$0xf]
        %v410 = vld [vmem:[%s212 + $0x278] sm:$0xf]
        %v411 = vld [vmem:[%s212 + $0x27c] sm:$0xf]
        %v412 = vld [vmem:[%s212 + $0x280] sm:$0xf]
        %v413 = vld [vmem:[%s212 + $0x284] sm:$0xf]
        %v414 = vld [vmem:[%s212 + $0x288] sm:$0xf]
        %v415 = vld [vmem:[%s212 + $0x28c] sm:$0xf]
        %v416 = vld [vmem:[%s212 + $0x290] sm:$0xf]
        %v417 = vld [vmem:[%s212 + $0x294] sm:$0xf]
        %v418 = vld [vmem:[%s212 + $0x298] sm:$0xf]
        %v419 = vld [vmem:[%s212 + $0x29c] sm:$0xf]
        %v420 = vld [vmem:[%s212 + $0x2a0] sm:$0xf]
        %v421 = vld [vmem:[%s212 + $0x2a4] sm:$0xf]
        %v422 = vld [vmem:[%s212 + $0x2a8] sm:$0xf]
        %v423 = vld [vmem:[%s212 + $0x2ac] sm:$0xf]
        %v424 = vld [vmem:[%s212 + $0x2b0] sm:$0xf]
        %v425 = vld [vmem:[%s212 + $0x2b4] sm:$0xf]
        %v426 = vld [vmem:[%s212 + $0x2b8] sm:$0xf]
        %v427 = vld [vmem:[%s212 + $0x2bc] sm:$0xf]
        %v428 = vld [vmem:[%s212 + $0x2c0] sm:$0xf]
        %v429 = vld [vmem:[%s212 + $0x2c4] sm:$0xf]
        %v430 = vld [vmem:[%s212 + $0x2c8] sm:$0xf]
        %v431 = vld [vmem:[%s212 + $0x2cc] sm:$0xf]
        %v432 = vld [vmem:[%s212 + $0x2d0] sm:$0xf]
        %v433 = vld [vmem:[%s212 + $0x2d4] sm:$0xf]
        %v434 = vld [vmem:[%s212 + $0x2d8] sm:$0xf]
        %v435 = vld [vmem:[%s212 + $0x2dc] sm:$0xf]
        %v436 = vld [vmem:[%s212 + $0x2e0] sm:$0xf]
        %v437 = vld [vmem:[%s212 + $0x2e4] sm:$0xf]
        %v438 = vld [vmem:[%s212 + $0x2e8] sm:$0xf]
        %v439 = vld [vmem:[%s212 + $0x2ec] sm:$0xf]
        %v440 = vld [vmem:[%s212 + $0x2f0] sm:$0xf]
        %v441 = vld [vmem:[%s212 + $0x2f4] sm:$0xf]
        %v442 = vld [vmem:[%s212 + $0x2f8] sm:$0xf]
        %v443 = vld [vmem:[%s212 + $0x2fc] sm:$0xf]
        %v444 = vld [vmem:[%s212 + $0x300] sm:$0xf]
        %v445 = vld [vmem:[%s212 + $0x304] sm:$0xf]
        %v446 = vld [vmem:[%s212 + $0x308] sm:$0xf]
        %v447 = vld [vmem:[%s212 + $0x30c] sm:$0xf]
        %v448 = vld [vmem:[%s212 + $0x310] sm:$0xf]
        %v449 = vld [vmem:[%s212 + $0x314] sm:$0xf]
        %v450 = vld [vmem:[%s212 + $0x318] sm:$0xf]
        %v451 = vld [vmem:[%s212 + $0x31c] sm:$0xf]
        %v452 = vld [vmem:[%s212 + $0x320] sm:$0xf]
        %v453 = vld [vmem:[%s212 + $0x324] sm:$0xf]
        %v454 = vld [vmem:[%s212 + $0x328] sm:$0xf]
        %v455 = vld [vmem:[%s212 + $0x32c] sm:$0xf]
        %v456 = vld [vmem:[%s212 + $0x330] sm:$0xf]
        %v457 = vld [vmem:[%s212 + $0x334] sm:$0xf]
        %v458 = vld [vmem:[%s212 + $0x338] sm:$0xf]
        %v459 = vld [vmem:[%s212 + $0x33c] sm:$0xf]
        %v460 = vld [vmem:[%s212 + $0x340] sm:$0xf]
        %v461 = vld [vmem:[%s212 + $0x344] sm:$0xf]
        %v462 = vld [vmem:[%s212 + $0x348] sm:$0xf]
        %v463 = vld [vmem:[%s212 + $0x34c] sm:$0xf]
        %v464 = vld [vmem:[%s212 + $0x350] sm:$0xf]
        %v465 = vld [vmem:[%s212 + $0x354] sm:$0xf]
        %v466 = vld [vmem:[%s212 + $0x358] sm:$0xf]
        %v467 = vld [vmem:[%s212 + $0x35c] sm:$0xf]
        %v468 = vld [vmem:[%s212 + $0x360] sm:$0xf]
        %v469 = vld [vmem:[%s212 + $0x364] sm:$0xf]
        %v470 = vld [vmem:[%s212 + $0x368] sm:$0xf]
        %v471 = vld [vmem:[%s212 + $0x36c] sm:$0xf]
        %v472 = vld [vmem:[%s212 + $0x370] sm:$0xf]
        %v473 = vld [vmem:[%s212 + $0x374] sm:$0xf]
        %v474 = vld [vmem:[%s212 + $0x378] sm:$0xf]
        %v475 = vld [vmem:[%s212 + $0x37c] sm:$0xf]
        %v476 = vld [vmem:[%s212 + $0x380] sm:$0xf]
        %v477 = vld [vmem:[%s212 + $0x384] sm:$0xf]
        %v478 = vld [vmem:[%s212 + $0x388] sm:$0xf]
        %v479 = vld [vmem:[%s212 + $0x38c] sm:$0xf]
        %v480 = vld [vmem:[%s212 + $0x390] sm:$0xf]
        %v481 = vld [vmem:[%s212 + $0x394] sm:$0xf]
        %v482 = vld [vmem:[%s212 + $0x398] sm:$0xf]
        %v483 = vld [vmem:[%s212 + $0x39c] sm:$0xf]
        %v484 = vld [vmem:[%s212 + $0x3a0] sm:$0xf]
        %v485 = vld [vmem:[%s212 + $0x3a4] sm:$0xf]
        %v486 = vld [vmem:[%s212 + $0x3a8] sm:$0xf]
        %v487 = vld [vmem:[%s212 + $0x3ac] sm:$0xf]
        %v488 = vld [vmem:[%s212 + $0x3b0] sm:$0xf]
        %v489 = vld [vmem:[%s212 + $0x3b4] sm:$0xf]
        %v490 = vld [vmem:[%s212 + $0x3b8] sm:$0xf]
        %v491 = vld [vmem:[%s212 + $0x3bc] sm:$0xf]
        %v492 = vld [vmem:[%s212 + $0x3c0] sm:$0xf]
        %v493 = vld [vmem:[%s212 + $0x3c4] sm:$0xf]
        %v494 = vld [vmem:[%s212 + $0x3c8] sm:$0xf]
        %v495 = vld [vmem:[%s212 + $0x3cc] sm:$0xf]
        %v496 = vld [vmem:[%s212 + $0x3d0] sm:$0xf]
        %v497 = vld [vmem:[%s212 + $0x3d4] sm:$0xf]
        %v498 = vld [vmem:[%s212 + $0x3d8] sm:$0xf]
        %v499 = vld [vmem:[%s212 + $0x3dc] sm:$0xf]
        %v500 = vld [vmem:[%s212 + $0x3e0] sm:$0xf]
        %v501 = vld [vmem:[%s212 + $0x3e4] sm:$0xf]
        %v502 = vld [vmem:[%s212 + $0x3e8] sm:$0xf]
        %v503 = vld [vmem:[%s212 + $0x3ec] sm:$0xf]
        %v504 = vld [vmem:[%s212 + $0x3f0] sm:$0xf]
        %v505 = vld [vmem:[%s212 + $0x3f4] sm:$0xf]
        %v506 = vld [vmem:[%s212 + $0x3f8] sm:$0xf]
        %v507 = vld [vmem:[%s212 + $0x3fc] sm:$0xf]
        %v508 = vld [vmem:[%s242] sm:$0x1]
        %v510 = vlaneseq
        %v511 = vshrl.u32 %v510, 7
        %v512 = vsub.s32 0, %v511
        %v513 = vrot.slane %v508, %v512
        %v523 = vunpack.c.l.b16 %v244
        %v524 = vunpack.c.h.b16 %v244
        %v525 = vunpack.c.l.b16 %v245
        %v526 = vunpack.c.h.b16 %v245
        %v527 = vunpack.c.l.b16 %v246
        %v528 = vunpack.c.h.b16 %v246
        %v529 = vunpack.c.l.b16 %v247
        %v530 = vunpack.c.h.b16 %v247
        %v531 = vunpack.c.l.b16 %v248
        %v532 = vunpack.c.h.b16 %v248
        %v533 = vunpack.c.l.b16 %v249
        %v534 = vunpack.c.h.b16 %v249
        %v535 = vunpack.c.l.b16 %v250
        %v536 = vunpack.c.h.b16 %v250
        %v537 = vunpack.c.l.b16 %v251
        %v538 = vunpack.c.h.b16 %v251
        %v539 = vpack.c.b16 %v523, %v523
        %v540 = vpack.c.b16 %v524, %v524
        %v541 = vpack.c.b16 %v525, %v525
        %v542 = vpack.c.b16 %v526, %v526
        %v543 = vpack.c.b16 %v527, %v527
        %v544 = vpack.c.b16 %v528, %v528
        %v545 = vpack.c.b16 %v529, %v529
        %v546 = vpack.c.b16 %v530, %v530
        %v547 = vpack.c.b16 %v531, %v531
        %v548 = vpack.c.b16 %v532, %v532
        %v549 = vpack.c.b16 %v533, %v533
        %v550 = vpack.c.b16 %v534, %v534
        %v551 = vpack.c.b16 %v535, %v535
        %v552 = vpack.c.b16 %v536, %v536
        %v553 = vpack.c.b16 %v537, %v537
        %v554 = vpack.c.b16 %v538, %v538
        %v827 = vunpack.c.l.b16 %v252
        %v828 = vunpack.c.l.b16 %v253
        %v829 = vunpack.c.l.b16 %v254
        %v830 = vunpack.c.l.b16 %v255
        %v831 = vunpack.c.l.b16 %v256
        %v832 = vunpack.c.l.b16 %v257
        %v833 = vunpack.c.l.b16 %v258
        %v834 = vunpack.c.l.b16 %v259
        %v835 = vunpack.c.l.b16 %v260
        %v836 = vunpack.c.l.b16 %v261
        %v837 = vunpack.c.l.b16 %v262
        %v838 = vunpack.c.l.b16 %v263
        %v839 = vunpack.c.l.b16 %v264
        %v840 = vunpack.c.l.b16 %v265
        %v841 = vunpack.c.l.b16 %v266
        %v842 = vunpack.c.l.b16 %v267
        %v843 = vunpack.c.l.b16 %v268
        %v844 = vunpack.c.l.b16 %v269
        %v845 = vunpack.c.l.b16 %v270
        %v846 = vunpack.c.l.b16 %v271
        %v847 = vunpack.c.l.b16 %v272
        %v848 = vunpack.c.l.b16 %v273
        %v849 = vunpack.c.l.b16 %v274
        %v850 = vunpack.c.l.b16 %v275
        %v851 = vunpack.c.l.b16 %v276
        %v852 = vunpack.c.l.b16 %v277
        %v853 = vunpack.c.l.b16 %v278
        %v854 = vunpack.c.l.b16 %v279
        %v855 = vunpack.c.l.b16 %v280
        %v856 = vunpack.c.l.b16 %v281
        %v857 = vunpack.c.l.b16 %v282
        %v858 = vunpack.c.l.b16 %v283
        %v859 = vunpack.c.l.b16 %v284
        %v860 = vunpack.c.l.b16 %v285
        %v861 = vunpack.c.l.b16 %v286
        %v862 = vunpack.c.l.b16 %v287
        %v863 = vunpack.c.l.b16 %v288
        %v864 = vunpack.c.l.b16 %v289
        %v865 = vunpack.c.l.b16 %v290
        %v866 = vunpack.c.l.b16 %v291
        %v867 = vunpack.c.l.b16 %v292
        %v868 = vunpack.c.l.b16 %v293
        %v869 = vunpack.c.l.b16 %v294
        %v870 = vunpack.c.l.b16 %v295
        %v871 = vunpack.c.l.b16 %v296
        %v872 = vunpack.c.l.b16 %v297
        %v873 = vunpack.c.l.b16 %v298
        %v874 = vunpack.c.l.b16 %v299
        %v875 = vunpack.c.l.b16 %v300
        %v876 = vunpack.c.l.b16 %v301
        %v877 = vunpack.c.l.b16 %v302
        %v878 = vunpack.c.l.b16 %v303
        %v879 = vunpack.c.l.b16 %v304
        %v880 = vunpack.c.l.b16 %v305
        %v881 = vunpack.c.l.b16 %v306
        %v882 = vunpack.c.l.b16 %v307
        %v883 = vunpack.c.l.b16 %v308
        %v884 = vunpack.c.l.b16 %v309
        %v885 = vunpack.c.l.b16 %v310
        %v886 = vunpack.c.l.b16 %v311
        %v887 = vunpack.c.l.b16 %v312
        %v888 = vunpack.c.l.b16 %v313
        %v889 = vunpack.c.l.b16 %v314
        %v890 = vunpack.c.l.b16 %v315
        %v891 = vunpack.c.l.b16 %v316
        %v892 = vunpack.c.l.b16 %v317
        %v893 = vunpack.c.l.b16 %v318
        %v894 = vunpack.c.l.b16 %v319
        %v895 = vunpack.c.l.b16 %v320
        %v896 = vunpack.c.l.b16 %v321
        %v897 = vunpack.c.l.b16 %v322
        %v898 = vunpack.c.l.b16 %v323
        %v899 = vunpack.c.l.b16 %v324
        %v900 = vunpack.c.l.b16 %v325
        %v901 = vunpack.c.l.b16 %v326
        %v902 = vunpack.c.l.b16 %v327
        %v903 = vunpack.c.l.b16 %v328
        %v904 = vunpack.c.l.b16 %v329
        %v905 = vunpack.c.l.b16 %v330
        %v906 = vunpack.c.l.b16 %v331
        %v907 = vunpack.c.l.b16 %v332
        %v908 = vunpack.c.l.b16 %v333
        %v909 = vunpack.c.l.b16 %v334
        %v910 = vunpack.c.l.b16 %v335
        %v911 = vunpack.c.l.b16 %v336
        %v912 = vunpack.c.l.b16 %v337
        %v913 = vunpack.c.l.b16 %v338
        %v914 = vunpack.c.l.b16 %v339
        %v915 = vunpack.c.l.b16 %v340
        %v916 = vunpack.c.l.b16 %v341
        %v917 = vunpack.c.l.b16 %v342
        %v918 = vunpack.c.l.b16 %v343
        %v919 = vunpack.c.l.b16 %v344
        %v920 = vunpack.c.l.b16 %v345
        %v921 = vunpack.c.l.b16 %v346
        %v922 = vunpack.c.l.b16 %v347
        %v923 = vunpack.c.l.b16 %v348
        %v924 = vunpack.c.l.b16 %v349
        %v925 = vunpack.c.l.b16 %v350
        %v926 = vunpack.c.l.b16 %v351
        %v927 = vunpack.c.l.b16 %v352
        %v928 = vunpack.c.l.b16 %v353
        %v929 = vunpack.c.l.b16 %v354
        %v930 = vunpack.c.l.b16 %v355
        %v931 = vunpack.c.l.b16 %v356
        %v932 = vunpack.c.l.b16 %v357
        %v933 = vunpack.c.l.b16 %v358
        %v934 = vunpack.c.l.b16 %v359
        %v935 = vunpack.c.l.b16 %v360
        %v936 = vunpack.c.l.b16 %v361
        %v937 = vunpack.c.l.b16 %v362
        %v938 = vunpack.c.l.b16 %v363
        %v939 = vunpack.c.l.b16 %v364
        %v940 = vunpack.c.l.b16 %v365
        %v941 = vunpack.c.l.b16 %v366
        %v942 = vunpack.c.l.b16 %v367
        %v943 = vunpack.c.l.b16 %v368
        %v944 = vunpack.c.l.b16 %v369
        %v945 = vunpack.c.l.b16 %v370
        %v946 = vunpack.c.l.b16 %v371
        %v947 = vunpack.c.l.b16 %v372
        %v948 = vunpack.c.l.b16 %v373
        %v949 = vunpack.c.l.b16 %v374
        %v950 = vunpack.c.l.b16 %v375
        %v951 = vunpack.c.l.b16 %v376
        %v952 = vunpack.c.l.b16 %v377
        %v953 = vunpack.c.l.b16 %v378
        %v954 = vunpack.c.l.b16 %v379
        %v955 = vunpack.c.l.b16 %v380
        %v956 = vunpack.c.l.b16 %v381
        %v957 = vunpack.c.l.b16 %v382
        %v958 = vunpack.c.l.b16 %v383
        %v959 = vunpack.c.l.b16 %v384
        %v960 = vunpack.c.l.b16 %v385
        %v961 = vunpack.c.l.b16 %v386
        %v962 = vunpack.c.l.b16 %v387
        %v963 = vunpack.c.l.b16 %v388
        %v964 = vunpack.c.l.b16 %v389
        %v965 = vunpack.c.l.b16 %v390
        %v966 = vunpack.c.l.b16 %v391
        %v967 = vunpack.c.l.b16 %v392
        %v968 = vunpack.c.l.b16 %v393
        %v969 = vunpack.c.l.b16 %v394
        %v970 = vunpack.c.l.b16 %v395
        %v971 = vunpack.c.l.b16 %v396
        %v972 = vunpack.c.l.b16 %v397
        %v973 = vunpack.c.l.b16 %v398
        %v974 = vunpack.c.l.b16 %v399
        %v975 = vunpack.c.l.b16 %v400
        %v976 = vunpack.c.l.b16 %v401
        %v977 = vunpack.c.l.b16 %v402
        %v978 = vunpack.c.l.b16 %v403
        %v979 = vunpack.c.l.b16 %v404
        %v980 = vunpack.c.l.b16 %v405
        %v981 = vunpack.c.l.b16 %v406
        %v982 = vunpack.c.l.b16 %v407
        %v983 = vunpack.c.l.b16 %v408
        %v984 = vunpack.c.l.b16 %v409
        %v985 = vunpack.c.l.b16 %v410
        %v986 = vunpack.c.l.b16 %v411
        %v987 = vunpack.c.l.b16 %v412
        %v988 = vunpack.c.l.b16 %v413
        %v989 = vunpack.c.l.b16 %v414
        %v990 = vunpack.c.l.b16 %v415
        %v991 = vunpack.c.l.b16 %v416
        %v992 = vunpack.c.l.b16 %v417
        %v993 = vunpack.c.l.b16 %v418
        %v994 = vunpack.c.l.b16 %v419
        %v995 = vunpack.c.l.b16 %v420
        %v996 = vunpack.c.l.b16 %v421
        %v997 = vunpack.c.l.b16 %v422
        %v998 = vunpack.c.l.b16 %v423
        %v999 = vunpack.c.l.b16 %v424
        %v1000 = vunpack.c.l.b16 %v425
        %v1001 = vunpack.c.l.b16 %v426
        %v1002 = vunpack.c.l.b16 %v427
        %v1003 = vunpack.c.l.b16 %v428
        %v1004 = vunpack.c.l.b16 %v429
        %v1005 = vunpack.c.l.b16 %v430
        %v1006 = vunpack.c.l.b16 %v431
        %v1007 = vunpack.c.l.b16 %v432
        %v1008 = vunpack.c.l.b16 %v433
        %v1009 = vunpack.c.l.b16 %v434
        %v1010 = vunpack.c.l.b16 %v435
        %v1011 = vunpack.c.l.b16 %v436
        %v1012 = vunpack.c.l.b16 %v437
        %v1013 = vunpack.c.l.b16 %v438
        %v1014 = vunpack.c.l.b16 %v439
        %v1015 = vunpack.c.l.b16 %v440
        %v1016 = vunpack.c.l.b16 %v441
        %v1017 = vunpack.c.l.b16 %v442
        %v1018 = vunpack.c.l.b16 %v443
        %v1019 = vunpack.c.l.b16 %v444
        %v1020 = vunpack.c.l.b16 %v445
        %v1021 = vunpack.c.l.b16 %v446
        %v1022 = vunpack.c.l.b16 %v447
        %v1023 = vunpack.c.l.b16 %v448
        %v1024 = vunpack.c.l.b16 %v449
        %v1025 = vunpack.c.l.b16 %v450
        %v1026 = vunpack.c.l.b16 %v451
        %v1027 = vunpack.c.l.b16 %v452
        %v1028 = vunpack.c.l.b16 %v453
        %v1029 = vunpack.c.l.b16 %v454
        %v1030 = vunpack.c.l.b16 %v455
        %v1031 = vunpack.c.l.b16 %v456
        %v1032 = vunpack.c.l.b16 %v457
        %v1033 = vunpack.c.l.b16 %v458
        %v1034 = vunpack.c.l.b16 %v459
        %v1035 = vunpack.c.l.b16 %v460
        %v1036 = vunpack.c.l.b16 %v461
        %v1037 = vunpack.c.l.b16 %v462
        %v1038 = vunpack.c.l.b16 %v463
        %v1039 = vunpack.c.l.b16 %v464
        %v1040 = vunpack.c.l.b16 %v465
        %v1041 = vunpack.c.l.b16 %v466
        %v1042 = vunpack.c.l.b16 %v467
        %v1043 = vunpack.c.l.b16 %v468
        %v1044 = vunpack.c.l.b16 %v469
        %v1045 = vunpack.c.l.b16 %v470
        %v1046 = vunpack.c.l.b16 %v471
        %v1047 = vunpack.c.l.b16 %v472
        %v1048 = vunpack.c.l.b16 %v473
        %v1049 = vunpack.c.l.b16 %v474
        %v1050 = vunpack.c.l.b16 %v475
        %v1051 = vunpack.c.l.b16 %v476
        %v1052 = vunpack.c.l.b16 %v477
        %v1053 = vunpack.c.l.b16 %v478
        %v1054 = vunpack.c.l.b16 %v479
        %v1055 = vunpack.c.l.b16 %v480
        %v1056 = vunpack.c.l.b16 %v481
        %v1057 = vunpack.c.l.b16 %v482
        %v1058 = vunpack.c.l.b16 %v483
        %v1059 = vunpack.c.l.b16 %v484
        %v1060 = vunpack.c.l.b16 %v485
        %v1061 = vunpack.c.l.b16 %v486
        %v1062 = vunpack.c.l.b16 %v487
        %v1063 = vunpack.c.l.b16 %v488
        %v1064 = vunpack.c.l.b16 %v489
        %v1065 = vunpack.c.l.b16 %v490
        %v1066 = vunpack.c.l.b16 %v491
        %v1067 = vunpack.c.l.b16 %v492
        %v1068 = vunpack.c.l.b16 %v493
        %v1069 = vunpack.c.l.b16 %v494
        %v1070 = vunpack.c.l.b16 %v495
        %v1071 = vunpack.c.l.b16 %v496
        %v1072 = vunpack.c.l.b16 %v497
        %v1073 = vunpack.c.l.b16 %v498
        %v1074 = vunpack.c.l.b16 %v499
        %v1075 = vunpack.c.l.b16 %v500
        %v1076 = vunpack.c.l.b16 %v501
        %v1077 = vunpack.c.l.b16 %v502
        %v1078 = vunpack.c.l.b16 %v503
        %v1079 = vunpack.c.l.b16 %v504
        %v1080 = vunpack.c.l.b16 %v505
        %v1081 = vunpack.c.l.b16 %v506
        %v1082 = vunpack.c.l.b16 %v507
        %v1083 = vpack.c.b16 %v828, %v827
        %v1084 = vpack.c.b16 %v830, %v829
        %v1085 = vpack.c.b16 %v832, %v831
        %v1086 = vpack.c.b16 %v834, %v833
        %v1087 = vpack.c.b16 %v836, %v835
        %v1088 = vpack.c.b16 %v838, %v837
        %v1089 = vpack.c.b16 %v840, %v839
        %v1090 = vpack.c.b16 %v842, %v841
        %v1091 = vpack.c.b16 %v844, %v843
        %v1092 = vpack.c.b16 %v846, %v845
        %v1093 = vpack.c.b16 %v848, %v847
        %v1094 = vpack.c.b16 %v850, %v849
        %v1095 = vpack.c.b16 %v852, %v851
        %v1096 = vpack.c.b16 %v854, %v853
        %v1097 = vpack.c.b16 %v856, %v855
        %v1098 = vpack.c.b16 %v858, %v857
        %v1099 = vpack.c.b16 %v860, %v859
        %v1100 = vpack.c.b16 %v862, %v861
        %v1101 = vpack.c.b16 %v864, %v863
        %v1102 = vpack.c.b16 %v866, %v865
        %v1103 = vpack.c.b16 %v868, %v867
        %v1104 = vpack.c.b16 %v870, %v869
        %v1105 = vpack.c.b16 %v872, %v871
        %v1106 = vpack.c.b16 %v874, %v873
        %v1107 = vpack.c.b16 %v876, %v875
        %v1108 = vpack.c.b16 %v878, %v877
        %v1109 = vpack.c.b16 %v880, %v879
        %v1110 = vpack.c.b16 %v882, %v881
        %v1111 = vpack.c.b16 %v884, %v883
        %v1112 = vpack.c.b16 %v886, %v885
        %v1113 = vpack.c.b16 %v888, %v887
        %v1114 = vpack.c.b16 %v890, %v889
        %v1115 = vpack.c.b16 %v892, %v891
        %v1116 = vpack.c.b16 %v894, %v893
        %v1117 = vpack.c.b16 %v896, %v895
        %v1118 = vpack.c.b16 %v898, %v897
        %v1119 = vpack.c.b16 %v900, %v899
        %v1120 = vpack.c.b16 %v902, %v901
        %v1121 = vpack.c.b16 %v904, %v903
        %v1122 = vpack.c.b16 %v906, %v905
        %v1123 = vpack.c.b16 %v908, %v907
        %v1124 = vpack.c.b16 %v910, %v909
        %v1125 = vpack.c.b16 %v912, %v911
        %v1126 = vpack.c.b16 %v914, %v913
        %v1127 = vpack.c.b16 %v916, %v915
        %v1128 = vpack.c.b16 %v918, %v917
        %v1129 = vpack.c.b16 %v920, %v919
        %v1130 = vpack.c.b16 %v922, %v921
        %v1131 = vpack.c.b16 %v924, %v923
        %v1132 = vpack.c.b16 %v926, %v925
        %v1133 = vpack.c.b16 %v928, %v927
        %v1134 = vpack.c.b16 %v930, %v929
        %v1135 = vpack.c.b16 %v932, %v931
        %v1136 = vpack.c.b16 %v934, %v933
        %v1137 = vpack.c.b16 %v936, %v935
        %v1138 = vpack.c.b16 %v938, %v937
        %v1139 = vpack.c.b16 %v940, %v939
        %v1140 = vpack.c.b16 %v942, %v941
        %v1141 = vpack.c.b16 %v944, %v943
        %v1142 = vpack.c.b16 %v946, %v945
        %v1143 = vpack.c.b16 %v948, %v947
        %v1144 = vpack.c.b16 %v950, %v949
        %v1145 = vpack.c.b16 %v952, %v951
        %v1146 = vpack.c.b16 %v954, %v953
        %v1147 = vpack.c.b16 %v956, %v955
        %v1148 = vpack.c.b16 %v958, %v957
        %v1149 = vpack.c.b16 %v960, %v959
        %v1150 = vpack.c.b16 %v962, %v961
        %v1151 = vpack.c.b16 %v964, %v963
        %v1152 = vpack.c.b16 %v966, %v965
        %v1153 = vpack.c.b16 %v968, %v967
        %v1154 = vpack.c.b16 %v970, %v969
        %v1155 = vpack.c.b16 %v972, %v971
        %v1156 = vpack.c.b16 %v974, %v973
        %v1157 = vpack.c.b16 %v976, %v975
        %v1158 = vpack.c.b16 %v978, %v977
        %v1159 = vpack.c.b16 %v980, %v979
        %v1160 = vpack.c.b16 %v982, %v981
        %v1161 = vpack.c.b16 %v984, %v983
        %v1162 = vpack.c.b16 %v986, %v985
        %v1163 = vpack.c.b16 %v988, %v987
        %v1164 = vpack.c.b16 %v990, %v989
        %v1165 = vpack.c.b16 %v992, %v991
        %v1166 = vpack.c.b16 %v994, %v993
        %v1167 = vpack.c.b16 %v996, %v995
        %v1168 = vpack.c.b16 %v998, %v997
        %v1169 = vpack.c.b16 %v1000, %v999
        %v1170 = vpack.c.b16 %v1002, %v1001
        %v1171 = vpack.c.b16 %v1004, %v1003
        %v1172 = vpack.c.b16 %v1006, %v1005
        %v1173 = vpack.c.b16 %v1008, %v1007
        %v1174 = vpack.c.b16 %v1010, %v1009
        %v1175 = vpack.c.b16 %v1012, %v1011
        %v1176 = vpack.c.b16 %v1014, %v1013
        %v1177 = vpack.c.b16 %v1016, %v1015
        %v1178 = vpack.c.b16 %v1018, %v1017
        %v1179 = vpack.c.b16 %v1020, %v1019
        %v1180 = vpack.c.b16 %v1022, %v1021
        %v1181 = vpack.c.b16 %v1024, %v1023
        %v1182 = vpack.c.b16 %v1026, %v1025
        %v1183 = vpack.c.b16 %v1028, %v1027
        %v1184 = vpack.c.b16 %v1030, %v1029
        %v1185 = vpack.c.b16 %v1032, %v1031
        %v1186 = vpack.c.b16 %v1034, %v1033
        %v1187 = vpack.c.b16 %v1036, %v1035
        %v1188 = vpack.c.b16 %v1038, %v1037
        %v1189 = vpack.c.b16 %v1040, %v1039
        %v1190 = vpack.c.b16 %v1042, %v1041
        %v1191 = vpack.c.b16 %v1044, %v1043
        %v1192 = vpack.c.b16 %v1046, %v1045
        %v1193 = vpack.c.b16 %v1048, %v1047
        %v1194 = vpack.c.b16 %v1050, %v1049
        %v1195 = vpack.c.b16 %v1052, %v1051
        %v1196 = vpack.c.b16 %v1054, %v1053
        %v1197 = vpack.c.b16 %v1056, %v1055
        %v1198 = vpack.c.b16 %v1058, %v1057
        %v1199 = vpack.c.b16 %v1060, %v1059
        %v1200 = vpack.c.b16 %v1062, %v1061
        %v1201 = vpack.c.b16 %v1064, %v1063
        %v1202 = vpack.c.b16 %v1066, %v1065
        %v1203 = vpack.c.b16 %v1068, %v1067
        %v1204 = vpack.c.b16 %v1070, %v1069
        %v1205 = vpack.c.b16 %v1072, %v1071
        %v1206 = vpack.c.b16 %v1074, %v1073
        %v1207 = vpack.c.b16 %v1076, %v1075
        %v1208 = vpack.c.b16 %v1078, %v1077
        %v1209 = vpack.c.b16 %v1080, %v1079
        %v1210 = vpack.c.b16 %v1082, %v1081
        %1339 = vmatprep.subr.bf16.mxu0 0
        %1340 = vmatpush1.bf16.msra.mxu0 %v1083
        %1341 = vmatprep.subr.bf16.mxu0 0
        %1342 = vmatpush1.bf16.msra.mxu0 %v1084
        %1343 = vmatprep.subr.bf16.mxu0 0
        %1344 = vmatpush1.bf16.msra.mxu0 %v1085
        %1345 = vmatprep.subr.bf16.mxu0 0
        %1346 = vmatpush1.bf16.msra.mxu0 %v1086
        %1347 = vmatprep.subr.bf16.mxu0 0
        %1348 = vmatpush1.bf16.msra.mxu0 %v1087
        %1349 = vmatprep.subr.bf16.mxu0 0
        %1350 = vmatpush1.bf16.msra.mxu0 %v1088
        %1351 = vmatprep.subr.bf16.mxu0 0
        %1352 = vmatpush1.bf16.msra.mxu0 %v1089
        %1353 = vmatprep.subr.bf16.mxu0 0
        %1354 = vmatpush1.bf16.msra.mxu0 %v1090
        %1355 = vmatprep.subr.bf16.mxu0 0
        %1356 = vmatpush1.bf16.msra.mxu0 %v1091
        %1357 = vmatprep.subr.bf16.mxu0 0
        %1358 = vmatpush1.bf16.msra.mxu0 %v1092
        %1359 = vmatprep.subr.bf16.mxu0 0
        %1360 = vmatpush1.bf16.msra.mxu0 %v1093
        %1361 = vmatprep.subr.bf16.mxu0 0
        %1362 = vmatpush1.bf16.msra.mxu0 %v1094
        %1363 = vmatprep.subr.bf16.mxu0 0
        %1364 = vmatpush1.bf16.msra.mxu0 %v1095
        %1365 = vmatprep.subr.bf16.mxu0 0
        %1366 = vmatpush1.bf16.msra.mxu0 %v1096
        %1367 = vmatprep.subr.bf16.mxu0 0
        %1368 = vmatpush1.bf16.msra.mxu0 %v1097
        %1369 = vmatprep.subr.bf16.mxu0 0
        %1370 = vmatpush1.bf16.msra.mxu0 %v1098
        %1371 = vmatprep.mubr.bf16.mxu0 %v540
        %1372 = vmatmul.mubr.bf16.gmra.mrb[0].mxu0 %v539
        %v1373 = vpop.f32.mrb[0].mxu0
        %v1374 = vadd.f32 %v513, %v1373
        %v1375 = vpop.f32.mrb[0].mxu0
        %v1376 = vpop.f32.mrb[0].mxu0
        %v1377 = vpop.f32.mrb[0].mxu0
        %1378 = vdwg.mxu0
        %1379 = vmatprep.subr.bf16.mxu0 0
        %1380 = vmatpush1.bf16.msra.mxu0 %v1099
        %1381 = vmatprep.subr.bf16.mxu0 0
        %1382 = vmatpush1.bf16.msra.mxu0 %v1100
        %1383 = vmatprep.subr.bf16.mxu0 0
        %1384 = vmatpush1.bf16.msra.mxu0 %v1101
        %1385 = vmatprep.subr.bf16.mxu0 0
        %1386 = vmatpush1.bf16.msra.mxu0 %v1102
        %1387 = vmatprep.subr.bf16.mxu0 0
        %1388 = vmatpush1.bf16.msra.mxu0 %v1103
        %1389 = vmatprep.subr.bf16.mxu0 0
        %1390 = vmatpush1.bf16.msra.mxu0 %v1104
        %1391 = vmatprep.subr.bf16.mxu0 0
        %1392 = vmatpush1.bf16.msra.mxu0 %v1105
        %1393 = vmatprep.subr.bf16.mxu0 0
        %1394 = vmatpush1.bf16.msra.mxu0 %v1106
        %1395 = vmatprep.subr.bf16.mxu0 0
        %1396 = vmatpush1.bf16.msra.mxu0 %v1107
        %1397 = vmatprep.subr.bf16.mxu0 0
        %1398 = vmatpush1.bf16.msra.mxu0 %v1108
        %1399 = vmatprep.subr.bf16.mxu0 0
        %1400 = vmatpush1.bf16.msra.mxu0 %v1109
        %1401 = vmatprep.subr.bf16.mxu0 0
        %1402 = vmatpush1.bf16.msra.mxu0 %v1110
        %1403 = vmatprep.subr.bf16.mxu0 0
        %1404 = vmatpush1.bf16.msra.mxu0 %v1111
        %1405 = vmatprep.subr.bf16.mxu0 0
        %1406 = vmatpush1.bf16.msra.mxu0 %v1112
        %1407 = vmatprep.subr.bf16.mxu0 0
        %1408 = vmatpush1.bf16.msra.mxu0 %v1113
        %1409 = vmatprep.subr.bf16.mxu0 0
        %1410 = vmatpush1.bf16.msra.mxu0 %v1114
        %1411 = vmatprep.mubr.bf16.mxu0 %v542
        %1412 = vmatmul.mubr.bf16.gmra.mrb[0].mxu0 %v541
        %v1413 = vpop.f32.mrb[0].mxu0
        %v1414 = vadd.f32 %v1374, %v1413
        %v1415 = vpop.f32.mrb[0].mxu0
        %v1416 = vpop.f32.mrb[0].mxu0
        %v1417 = vpop.f32.mrb[0].mxu0
        %1418 = vdwg.mxu0
        %1419 = vmatprep.subr.bf16.mxu0 0
        %1420 = vmatpush1.bf16.msra.mxu0 %v1115
        %1421 = vmatprep.subr.bf16.mxu0 0
        %1422 = vmatpush1.bf16.msra.mxu0 %v1116
        %1423 = vmatprep.subr.bf16.mxu0 0
        %1424 = vmatpush1.bf16.msra.mxu0 %v1117
        %1425 = vmatprep.subr.bf16.mxu0 0
        %1426 = vmatpush1.bf16.msra.mxu0 %v1118
        %1427 = vmatprep.subr.bf16.mxu0 0
        %1428 = vmatpush1.bf16.msra.mxu0 %v1119
        %1429 = vmatprep.subr.bf16.mxu0 0
        %1430 = vmatpush1.bf16.msra.mxu0 %v1120
        %1431 = vmatprep.subr.bf16.mxu0 0
        %1432 = vmatpush1.bf16.msra.mxu0 %v1121
        %1433 = vmatprep.subr.bf16.mxu0 0
        %1434 = vmatpush1.bf16.msra.mxu0 %v1122
        %1435 = vmatprep.subr.bf16.mxu0 0
        %1436 = vmatpush1.bf16.msra.mxu0 %v1123
        %1437 = vmatprep.subr.bf16.mxu0 0
        %1438 = vmatpush1.bf16.msra.mxu0 %v1124
        %1439 = vmatprep.subr.bf16.mxu0 0
        %1440 = vmatpush1.bf16.msra.mxu0 %v1125
        %1441 = vmatprep.subr.bf16.mxu0 0
        %1442 = vmatpush1.bf16.msra.mxu0 %v1126
        %1443 = vmatprep.subr.bf16.mxu0 0
        %1444 = vmatpush1.bf16.msra.mxu0 %v1127
        %1445 = vmatprep.subr.bf16.mxu0 0
        %1446 = vmatpush1.bf16.msra.mxu0 %v1128
        %1447 = vmatprep.subr.bf16.mxu0 0
        %1448 = vmatpush1.bf16.msra.mxu0 %v1129
        %1449 = vmatprep.subr.bf16.mxu0 0
        %1450 = vmatpush1.bf16.msra.mxu0 %v1130
        %1451 = vmatprep.mubr.bf16.mxu0 %v544
        %1452 = vmatmul.mubr.bf16.gmra.mrb[0].mxu0 %v543
        %v1453 = vpop.f32.mrb[0].mxu0
        %v1454 = vadd.f32 %v1414, %v1453
        %v1455 = vpop.f32.mrb[0].mxu0
        %v1456 = vpop.f32.mrb[0].mxu0
        %v1457 = vpop.f32.mrb[0].mxu0
        %1458 = vdwg.mxu0
        %1459 = vmatprep.subr.bf16.mxu0 0
        %1460 = vmatpush1.bf16.msra.mxu0 %v1131
        %1461 = vmatprep.subr.bf16.mxu0 0
        %1462 = vmatpush1.bf16.msra.mxu0 %v1132
        %1463 = vmatprep.subr.bf16.mxu0 0
        %1464 = vmatpush1.bf16.msra.mxu0 %v1133
        %1465 = vmatprep.subr.bf16.mxu0 0
        %1466 = vmatpush1.bf16.msra.mxu0 %v1134
        %1467 = vmatprep.subr.bf16.mxu0 0
        %1468 = vmatpush1.bf16.msra.mxu0 %v1135
        %1469 = vmatprep.subr.bf16.mxu0 0
        %1470 = vmatpush1.bf16.msra.mxu0 %v1136
        %1471 = vmatprep.subr.bf16.mxu0 0
        %1472 = vmatpush1.bf16.msra.mxu0 %v1137
        %1473 = vmatprep.subr.bf16.mxu0 0
        %1474 = vmatpush1.bf16.msra.mxu0 %v1138
        %1475 = vmatprep.subr.bf16.mxu0 0
        %1476 = vmatpush1.bf16.msra.mxu0 %v1139
        %1477 = vmatprep.subr.bf16.mxu0 0
        %1478 = vmatpush1.bf16.msra.mxu0 %v1140
        %1479 = vmatprep.subr.bf16.mxu0 0
        %1480 = vmatpush1.bf16.msra.mxu0 %v1141
        %1481 = vmatprep.subr.bf16.mxu0 0
        %1482 = vmatpush1.bf16.msra.mxu0 %v1142
        %1483 = vmatprep.subr.bf16.mxu0 0
        %1484 = vmatpush1.bf16.msra.mxu0 %v1143
        %1485 = vmatprep.subr.bf16.mxu0 0
        %1486 = vmatpush1.bf16.msra.mxu0 %v1144
        %1487 = vmatprep.subr.bf16.mxu0 0
        %1488 = vmatpush1.bf16.msra.mxu0 %v1145
        %1489 = vmatprep.subr.bf16.mxu0 0
        %1490 = vmatpush1.bf16.msra.mxu0 %v1146
        %1491 = vmatprep.mubr.bf16.mxu0 %v546
        %1492 = vmatmul.mubr.bf16.gmra.mrb[0].mxu0 %v545
        %v1493 = vpop.f32.mrb[0].mxu0
        %v1494 = vadd.f32 %v1454, %v1493
        %v1495 = vpop.f32.mrb[0].mxu0
        %v1496 = vpop.f32.mrb[0].mxu0
        %v1497 = vpop.f32.mrb[0].mxu0
        %1498 = vdwg.mxu0
        %1499 = vmatprep.subr.bf16.mxu0 0
        %1500 = vmatpush1.bf16.msra.mxu0 %v1147
        %1501 = vmatprep.subr.bf16.mxu0 0
        %1502 = vmatpush1.bf16.msra.mxu0 %v1148
        %1503 = vmatprep.subr.bf16.mxu0 0
        %1504 = vmatpush1.bf16.msra.mxu0 %v1149
        %1505 = vmatprep.subr.bf16.mxu0 0
        %1506 = vmatpush1.bf16.msra.mxu0 %v1150
        %1507 = vmatprep.subr.bf16.mxu0 0
        %1508 = vmatpush1.bf16.msra.mxu0 %v1151
        %1509 = vmatprep.subr.bf16.mxu0 0
        %1510 = vmatpush1.bf16.msra.mxu0 %v1152
        %1511 = vmatprep.subr.bf16.mxu0 0
        %1512 = vmatpush1.bf16.msra.mxu0 %v1153
        %1513 = vmatprep.subr.bf16.mxu0 0
        %1514 = vmatpush1.bf16.msra.mxu0 %v1154
        %1515 = vmatprep.subr.bf16.mxu0 0
        %1516 = vmatpush1.bf16.msra.mxu0 %v1155
        %1517 = vmatprep.subr.bf16.mxu0 0
        %1518 = vmatpush1.bf16.msra.mxu0 %v1156
        %1519 = vmatprep.subr.bf16.mxu0 0
        %1520 = vmatpush1.bf16.msra.mxu0 %v1157
        %1521 = vmatprep.subr.bf16.mxu0 0
        %1522 = vmatpush1.bf16.msra.mxu0 %v1158
        %1523 = vmatprep.subr.bf16.mxu0 0
        %1524 = vmatpush1.bf16.msra.mxu0 %v1159
        %1525 = vmatprep.subr.bf16.mxu0 0
        %1526 = vmatpush1.bf16.msra.mxu0 %v1160
        %1527 = vmatprep.subr.bf16.mxu0 0
        %1528 = vmatpush1.bf16.msra.mxu0 %v1161
        %1529 = vmatprep.subr.bf16.mxu0 0
        %1530 = vmatpush1.bf16.msra.mxu0 %v1162
        %1531 = vmatprep.mubr.bf16.mxu0 %v548
        %1532 = vmatmul.mubr.bf16.gmra.mrb[0].mxu0 %v547
        %v1533 = vpop.f32.mrb[0].mxu0
        %v1534 = vadd.f32 %v1494, %v1533
        %v1535 = vpop.f32.mrb[0].mxu0
        %v1536 = vpop.f32.mrb[0].mxu0
        %v1537 = vpop.f32.mrb[0].mxu0
        %1538 = vdwg.mxu0
        %1539 = vmatprep.subr.bf16.mxu0 0
        %1540 = vmatpush1.bf16.msra.mxu0 %v1163
        %1541 = vmatprep.subr.bf16.mxu0 0
        %1542 = vmatpush1.bf16.msra.mxu0 %v1164
        %1543 = vmatprep.subr.bf16.mxu0 0
        %1544 = vmatpush1.bf16.msra.mxu0 %v1165
        %1545 = vmatprep.subr.bf16.mxu0 0
        %1546 = vmatpush1.bf16.msra.mxu0 %v1166
        %1547 = vmatprep.subr.bf16.mxu0 0
        %1548 = vmatpush1.bf16.msra.mxu0 %v1167
        %1549 = vmatprep.subr.bf16.mxu0 0
        %1550 = vmatpush1.bf16.msra.mxu0 %v1168
        %1551 = vmatprep.subr.bf16.mxu0 0
        %1552 = vmatpush1.bf16.msra.mxu0 %v1169
        %1553 = vmatprep.subr.bf16.mxu0 0
        %1554 = vmatpush1.bf16.msra.mxu0 %v1170
        %1555 = vmatprep.subr.bf16.mxu0 0
        %1556 = vmatpush1.bf16.msra.mxu0 %v1171
        %1557 = vmatprep.subr.bf16.mxu0 0
        %1558 = vmatpush1.bf16.msra.mxu0 %v1172
        %1559 = vmatprep.subr.bf16.mxu0 0
        %1560 = vmatpush1.bf16.msra.mxu0 %v1173
        %1561 = vmatprep.subr.bf16.mxu0 0
        %1562 = vmatpush1.bf16.msra.mxu0 %v1174
        %1563 = vmatprep.subr.bf16.mxu0 0
        %1564 = vmatpush1.bf16.msra.mxu0 %v1175
        %1565 = vmatprep.subr.bf16.mxu0 0
        %1566 = vmatpush1.bf16.msra.mxu0 %v1176
        %1567 = vmatprep.subr.bf16.mxu0 0
        %1568 = vmatpush1.bf16.msra.mxu0 %v1177
        %1569 = vmatprep.subr.bf16.mxu0 0
        %1570 = vmatpush1.bf16.msra.mxu0 %v1178
        %1571 = vmatprep.mubr.bf16.mxu0 %v550
        %1572 = vmatmul.mubr.bf16.gmra.mrb[0].mxu0 %v549
        %v1573 = vpop.f32.mrb[0].mxu0
        %v1574 = vadd.f32 %v1534, %v1573
        %v1575 = vpop.f32.mrb[0].mxu0
        %v1576 = vpop.f32.mrb[0].mxu0
        %v1577 = vpop.f32.mrb[0].mxu0
        %1578 = vdwg.mxu0
        %1579 = vmatprep.subr.bf16.mxu0 0
        %1580 = vmatpush1.bf16.msra.mxu0 %v1179
        %1581 = vmatprep.subr.bf16.mxu0 0
        %1582 = vmatpush1.bf16.msra.mxu0 %v1180
        %1583 = vmatprep.subr.bf16.mxu0 0
        %1584 = vmatpush1.bf16.msra.mxu0 %v1181
        %1585 = vmatprep.subr.bf16.mxu0 0
        %1586 = vmatpush1.bf16.msra.mxu0 %v1182
        %1587 = vmatprep.subr.bf16.mxu0 0
        %1588 = vmatpush1.bf16.msra.mxu0 %v1183
        %1589 = vmatprep.subr.bf16.mxu0 0
        %1590 = vmatpush1.bf16.msra.mxu0 %v1184
        %1591 = vmatprep.subr.bf16.mxu0 0
        %1592 = vmatpush1.bf16.msra.mxu0 %v1185
        %1593 = vmatprep.subr.bf16.mxu0 0
        %1594 = vmatpush1.bf16.msra.mxu0 %v1186
        %1595 = vmatprep.subr.bf16.mxu0 0
        %1596 = vmatpush1.bf16.msra.mxu0 %v1187
        %1597 = vmatprep.subr.bf16.mxu0 0
        %1598 = vmatpush1.bf16.msra.mxu0 %v1188
        %1599 = vmatprep.subr.bf16.mxu0 0
        %1600 = vmatpush1.bf16.msra.mxu0 %v1189
        %1601 = vmatprep.subr.bf16.mxu0 0
        %1602 = vmatpush1.bf16.msra.mxu0 %v1190
        %1603 = vmatprep.subr.bf16.mxu0 0
        %1604 = vmatpush1.bf16.msra.mxu0 %v1191
        %1605 = vmatprep.subr.bf16.mxu0 0
        %1606 = vmatpush1.bf16.msra.mxu0 %v1192
        %1607 = vmatprep.subr.bf16.mxu0 0
        %1608 = vmatpush1.bf16.msra.mxu0 %v1193
        %1609 = vmatprep.subr.bf16.mxu0 0
        %1610 = vmatpush1.bf16.msra.mxu0 %v1194
        %1611 = vmatprep.mubr.bf16.mxu0 %v552
        %1612 = vmatmul.mubr.bf16.gmra.mrb[0].mxu0 %v551
        %v1613 = vpop.f32.mrb[0].mxu0
        %v1614 = vadd.f32 %v1574, %v1613
        %v1615 = vpop.f32.mrb[0].mxu0
        %v1616 = vpop.f32.mrb[0].mxu0
        %v1617 = vpop.f32.mrb[0].mxu0
        %1618 = vdwg.mxu0
        %1619 = vmatprep.subr.bf16.mxu0 0
        %1620 = vmatpush1.bf16.msra.mxu0 %v1195
        %1621 = vmatprep.subr.bf16.mxu0 0
        %1622 = vmatpush1.bf16.msra.mxu0 %v1196
        %1623 = vmatprep.subr.bf16.mxu0 0
        %1624 = vmatpush1.bf16.msra.mxu0 %v1197
        %1625 = vmatprep.subr.bf16.mxu0 0
        %1626 = vmatpush1.bf16.msra.mxu0 %v1198
        %1627 = vmatprep.subr.bf16.mxu0 0
        %1628 = vmatpush1.bf16.msra.mxu0 %v1199
        %1629 = vmatprep.subr.bf16.mxu0 0
        %1630 = vmatpush1.bf16.msra.mxu0 %v1200
        %1631 = vmatprep.subr.bf16.mxu0 0
        %1632 = vmatpush1.bf16.msra.mxu0 %v1201
        %1633 = vmatprep.subr.bf16.mxu0 0
        %1634 = vmatpush1.bf16.msra.mxu0 %v1202
        %1635 = vmatprep.subr.bf16.mxu0 0
        %1636 = vmatpush1.bf16.msra.mxu0 %v1203
        %1637 = vmatprep.subr.bf16.mxu0 0
        %1638 = vmatpush1.bf16.msra.mxu0 %v1204
        %1639 = vmatprep.subr.bf16.mxu0 0
        %1640 = vmatpush1.bf16.msra.mxu0 %v1205
        %1641 = vmatprep.subr.bf16.mxu0 0
        %1642 = vmatpush1.bf16.msra.mxu0 %v1206
        %1643 = vmatprep.subr.bf16.mxu0 0
        %1644 = vmatpush1.bf16.msra.mxu0 %v1207
        %1645 = vmatprep.subr.bf16.mxu0 0
        %1646 = vmatpush1.bf16.msra.mxu0 %v1208
        %1647 = vmatprep.subr.bf16.mxu0 0
        %1648 = vmatpush1.bf16.msra.mxu0 %v1209
        %1649 = vmatprep.subr.bf16.mxu0 0
        %1650 = vmatpush1.bf16.msra.mxu0 %v1210
        %1651 = vmatprep.mubr.bf16.mxu0 %v554
        %1652 = vmatmul.mubr.bf16.gmra.mrb[0].mxu0 %v553
        %v1653 = vpop.f32.mrb[0].mxu0
        %v1654 = vadd.f32 %v1614, %v1653
        %v1655 = vpop.f32.mrb[0].mxu0
        %v1656 = vpop.f32.mrb[0].mxu0
        %v1657 = vpop.f32.mrb[0].mxu0
        %1658 = vdwg.mxu0
        %v1659 = vmax.f32 %v1654, 0.0
        %v1660 = vlaneseq
        %v1661 = vshrl.u32 %v1660, 7
        %v1662 = vlaneseq
        %v1663 = vand.u32 %v1662, 127
        %s1664 = smul.u32 %s23, 128
        %v1665 = vstv %s1664
        %v1666 = vadd.s32 %v1663, %v1665
        %v1667 = vmul.u32 %v1661, 256
        %v1668 = vadd.s32 %v1667, %v1666
        %s1669 = sld [smem:[#allocation2]]
        %v1670 = vstv %s1669
        %v1671 = vxor.u32 %v1668, %v1670
        %v1672 = vshrl.u32 %v1671, 16
        %v1673 = vxor.u32 %v1671, %v1672
        %v1674 = vmul.u32 %v1673, 2146121005
        %v1675 = vshrl.u32 %v1674, 15
        %v1676 = vxor.u32 %v1674, %v1675
        %v1677 = vmul.u32 %v1676, 2221713035
        %v1678 = vshrl.u32 %v1677, 16
        %v1679 = vxor.u32 %v1677, %v1678
        %v1680 = vand.u32 %v1679, 1
        %vm1681 = vcmp.eq.s32.totalorder %v1680, 0
        %v1682 = vmul.f32 %v1659, 2.0
        %v1683 = vsel %vm1681, %v1682, 0.0
        %1684 = vst [vmem:[%s239] sm:$0xff] %v1683
        %s1685 = sand.u32 %s125, 1
        %s1686 = scalar_lea.sflag [#allocation5], %s1685
        %s1687 = sand.u32 %s125, 1
        %s1688 = smul.addr %s1687, 8
        %s1689 = scalar_lea.vmem [#allocation8], %s1688
        // Predicated region
        $region45: #{tpu_custom_call.1} parent=35 // pred_check
          %p1690 = pneg %p135
        $region46: #{tpu_custom_call.1} parent=35 // pred_check_branch
          %1692 = sbr.rel (%p1690) target = $region48
        $region47: #{tpu_custom_call.1} parent=35 // pred_region
          %s1694 = ssub.s32 128, 128
          %1695 = vsyncadd %s1686, %s1694
          %s1696 = smul.addr %s23, 128
          %s1697 = scalar_lea.hbm %s4, %s1696
          %s1699 = sshll.u32 %s1689, 4
          %s1700 = int_to_ptr.vmem [resolvable:$true] %s1699
          %1702 = dma.vmem_to_hbm [thread:$0]  %s1700, 128, %s1697, %s1686
        $region48: #{tpu_custom_call.1} parent=35 // pred_fallthru
          _
      $region36: #{tpu_custom_call.1} parent=5 // pred_fallthru
        _
      %p1703 = scmp.le.s32.totalorder 2, %s18
      // Predicated region
      $region49: #{tpu_custom_call.1} parent=5 // pred_check
        %p1704 = pneg %p1703
      $region50: #{tpu_custom_call.1} parent=5 // pred_check_branch
        %1706 = sbr.rel (%p1704) target = $region52
      $region51: #{tpu_custom_call.1} parent=5 // pred_region
        %s1707 = ssub.s32 %s18, 2
        // Predicated region
        $region53: #{tpu_custom_call.1} parent=51 // pred_check
          %p1708 = pneg %p141
        $region54: #{tpu_custom_call.1} parent=51 // pred_check_branch
          %1710 = sbr.rel (%p1708) target = $region56
        $region55: #{tpu_custom_call.1} parent=51 // pred_region
          %s1711 = sand.u32 %s126, 1
          %s1712 = scalar_lea.sflag [#allocation5], %s1711
          %s1713 = sand.u32 %s126, 1
          %s1714 = smul.addr %s1713, 8
          %s1715 = scalar_lea.vmem [#allocation8], %s1714
          %1716 = dma.done %s1712, 128
        $region56: #{tpu_custom_call.1} parent=51 // pred_fallthru
          _
      $region52: #{tpu_custom_call.1} parent=5 // pred_fallthru
        _
    $region6: #{tpu_custom_call.1} parent=1 // loop_footer
      %s22 = sadd.s32 1, %s18
    $region7: #{tpu_custom_call.1} parent=1 // loop_footer_branch
      %17 = sbr.rel target = $region3
    $region8: #{tpu_custom_call.1} parent=1 // loop_exit
      _
    %1717 = vsyncpa [#allocation4], 1
    %s1718 = scalar_lea.sflag [#allocation4], 1
    %1719 = vsyncpa %s1718, 1
    %1720 = vsyncpa [#allocation7], 1
    %s1721 = scalar_lea.sflag [#allocation7], 1
    %1722 = vsyncpa %s1721, 1
    %1723 = vsyncpa [#allocation5], 1
    %s1724 = scalar_lea.sflag [#allocation5], 1
    %1725 = vsyncpa %s1724, 1

</llo_original>
